<compile_context>
chip_gen: v7x
topology: tpu7x:2x2x1
jax: 0.10.0
libtpu: 0.0.40
codegen_flags: <defaults>
</compile_context>

<pallas_src>
import jax
import jax.numpy as jnp
from jax.experimental import pallas as pl
from jax.experimental.pallas import tpu as pltpu

# ----------------------- model config (small, consistent with the module) ----
B = 2            # batch
SEQ = 16         # input_shape[0]
C_IN = 4         # input_shape[1]
C_OUT = 32       # num_filters (cnn_layers = gru_layers = 1 -> GRU input = C_OUT)
K = 3            # kernel_size
POOL = 2         # pool_size
L_POOL = SEQ // POOL
HID = 32         # hidden_size
N_STEPS = 8
BN_EPS = 1e-5

H2 = B * HID     # 64: GRU state width with batch folded into lanes

# packed parameter slab layout (one DMA) ---------------------------------------
P_ROWS = 72
P_LANES = 768
LANE_WI = 0      # (64, 192)  input->gates, block-diag in batch, gate order [r|z|n]
LANE_WH = 256    # (64, 192)  hidden->gates, block-diag in batch
LANE_WC = 512    # (24, 64)   conv (BN scale folded), rows (k,b,c), cols (b,o)
LANE_WFC = 640   # (64, 16)   final Linear, block-diag in batch
ROW_SHIFT = 64   # (64,)  folded conv-bias + BN affine, tiled per batch
ROW_BI = 65      # (192,) input bias with b_hh[r|z] folded in, tiled per batch
ROW_BHN = 66     # (64,)  b_hh[n], tiled per batch
ROW_BFC = 67     # (16,)  fc bias, tiled per batch


# ----------------- fused kernel: conv+BN+ReLU+pool -> GRU -> Linear -----------
def fused_kernel(xq_ref, p_ref, out_ref):
    """xq_ref: (9, 16) padded input packed as rows = time-pair m (positions 2m, 2m+1),
    lanes = (parity, batch, channel).  p_ref: (72, 768) packed parameter slab.
    out_ref: (B, N_STEPS)."""
    # ---- static slices of the packed parameter slab --------------------------
    wi2 = p_ref[0:H2, LANE_WI:LANE_WI + 3 * H2]                  # (64, 192)
    wh2 = p_ref[0:H2, LANE_WH:LANE_WH + 3 * H2]                  # (64, 192)
    wc = p_ref[0:K * B * C_IN, LANE_WC:LANE_WC + B * C_OUT]      # (24, 64)
    wfc2 = p_ref[0:H2, LANE_WFC:LANE_WFC + B * N_STEPS]          # (64, 16)
    shift2 = p_ref[ROW_SHIFT:ROW_SHIFT + 1, 0:B * C_OUT]         # (1, 64)
    bi2 = p_ref[ROW_BI:ROW_BI + 1, 0:3 * H2]                     # (1, 192)
    bhn2 = p_ref[ROW_BHN:ROW_BHN + 1, 0:H2]                      # (1, 64)
    bfc2 = p_ref[ROW_BFC:ROW_BFC + 1, 0:B * N_STEPS]             # (1, 16)

    # ---- Conv1d(k=3,pad=1) + BN + ReLU + MaxPool1d(2): two MXU dots -----------
    pair_lo = xq_ref[0:L_POOL, :]            # pairs j   -> positions 2j,   2j+1
    pair_hi = xq_ref[1:L_POOL + 1, :]        # pairs j+1 -> positions 2j+2, 2j+3
    w4 = jnp.concatenate([pair_lo, pair_hi], axis=1)             # (8, 32): pos 2j..2j+3
    s_even = w4[:, 0:K * B * C_IN]           # conv window at t=2j,   lanes (k,b,c)
    s_odd = w4[:, B * C_IN:4 * B * C_IN]     # conv window at t=2j+1, lanes (k,b,c)
    y_e = jnp.dot(s_even, wc, preferred_element_type=jnp.float32) + shift2
    y_o = jnp.dot(s_odd, wc, preferred_element_type=jnp.float32) + shift2
    feat = jnp.maximum(jnp.maximum(y_e, y_o), 0.0)               # (8, 64) rows j, lanes (b,o)

    # ---- GRU: input projections hoisted out of the recurrence ----------------
    gi_all = jnp.dot(feat, wi2, preferred_element_type=jnp.float32) + bi2    # (8, 192)

    # peeled step 0: h == 0 -> gh == 0 (r/z hidden biases already folded into bi2)
    gi0 = gi_all[0:1, :]
    rz = jax.nn.sigmoid(gi0[:, 0:2 * H2])                        # (1, 128) = [r | z]
    r, z = rz[:, 0:H2], rz[:, H2:2 * H2]
    n = jnp.tanh(gi0[:, 2 * H2:3 * H2] + r * bhn2)
    h = (1.0 - z) * n                                            # (1, 64)

    for t in range(1, L_POOL):                                   # short, static unroll
        gi = gi_all[t:t + 1, :]                                  # (1, 192)
        gh = jnp.dot(h, wh2, preferred_element_type=jnp.float32)  # (1, 192)
        rz = jax.nn.sigmoid(gi[:, 0:2 * H2] + gh[:, 0:2 * H2])   # one EUP call for r & z
        r, z = rz[:, 0:H2], rz[:, H2:2 * H2]
        n = jnp.tanh(gi[:, 2 * H2:3 * H2] + r * (gh[:, 2 * H2:3 * H2] + bhn2))
        h = (1.0 - z) * n + z * h

    # ---- final Linear (both batch rows live in lanes of h) --------------------
    o2 = jnp.dot(h, wfc2, preferred_element_type=jnp.float32) + bfc2         # (1, 16)
    out_ref[0:1, :] = o2[:, 0:N_STEPS]
    out_ref[1:2, :] = o2[:, N_STEPS:2 * N_STEPS]


_fused_call = pl.pallas_call(
    fused_kernel,
    out_shape=jax.ShapeDtypeStruct((B, N_STEPS), jnp.float32),
    in_specs=[pl.BlockSpec(memory_space=pltpu.MemorySpace.VMEM),
              pl.BlockSpec(memory_space=pltpu.MemorySpace.VMEM)],
    out_specs=pl.BlockSpec(memory_space=pltpu.MemorySpace.VMEM),
    cost_estimate=pl.CostEstimate(flops=430_000, transcendentals=1_600,
                                  bytes_accessed=224_000),
)


@jax.jit
def forward(x, p):
    """x: (B, SEQ, C_IN).  Only pad + pack (no gather): (9, 16) time-pair layout."""
    xp = jnp.pad(x, ((0, 0), (1, 1), (0, 0)))                    # (B, SEQ+2, C_IN)
    xq = jnp.transpose(xp, (1, 0, 2)).reshape((SEQ + 2) // 2, POOL * B * C_IN)
    return _fused_call(xq, p)


# ------------------------- host-side parameter packing ------------------------
def pack_params(conv_w, conv_b, bn_gamma, bn_beta, bn_mean, bn_var,
                w_ih, w_hh, b_ih, b_hh, fc_w, fc_b):
    inv_std = 1.0 / jnp.sqrt(bn_var + BN_EPS)
    scale = bn_gamma * inv_std                                   # (C_OUT,)
    shift = (conv_b - bn_mean) * scale + bn_beta                 # (C_OUT,)

    def block2(m):  # (R, C) -> (2R, 2C) block-diagonal (batch folded into lanes)
        rr, cc = m.shape
        zz = jnp.zeros((rr, cc), m.dtype)
        return jnp.concatenate([jnp.concatenate([m, zz], axis=1),
                                jnp.concatenate([zz, m], axis=1)], axis=0)

    # conv: rows (k, b, c), cols (b, o); BN scale folded into the weight
    wc = jnp.concatenate(
        [block2(conv_w[:, :, k].T * scale[None, :]) for k in range(K)], axis=0)   # (24, 64)

    wi = w_ih.T                                                  # (C_OUT, 3*HID), gates [r|z|n]
    wh = w_hh.T                                                  # (HID, 3*HID)
    wi2 = jnp.concatenate([block2(wi[:, g * HID:(g + 1) * HID]) for g in range(3)], axis=1)
    wh2 = jnp.concatenate([block2(wh[:, g * HID:(g + 1) * HID]) for g in range(3)], axis=1)
    wfc2 = block2(fc_w.T)                                        # (64, 16)

    # fold b_hh[r|z] into the input bias; b_hh[n] must stay separate (PyTorch GRU)
    bi_fold = b_ih + jnp.concatenate([b_hh[:2 * HID], jnp.zeros((HID,), jnp.float32)])
    bi2 = jnp.concatenate([jnp.tile(bi_fold[g * HID:(g + 1) * HID], B) for g in range(3)])
    shift2 = jnp.tile(shift, B)                                  # (64,)
    bhn2 = jnp.tile(b_hh[2 * HID:], B)                           # (64,)
    bfc2 = jnp.tile(fc_b, B)                                     # (16,)

    p = jnp.zeros((P_ROWS, P_LANES), jnp.float32)
    p = p.at[0:H2, LANE_WI:LANE_WI + 3 * H2].set(wi2)
    p = p.at[0:H2, LANE_WH:LANE_WH + 3 * H2].set(wh2)
    p = p.at[0:K * B * C_IN, LANE_WC:LANE_WC + B * C_OUT].set(wc)
    p = p.at[0:H2, LANE_WFC:LANE_WFC + B * N_STEPS].set(wfc2)
    p = p.at[ROW_SHIFT, 0:B * C_OUT].set(shift2)
    p = p.at[ROW_BI, 0:3 * H2].set(bi2)
    p = p.at[ROW_BHN, 0:H2].set(bhn2)
    p = p.at[ROW_BFC, 0:B * N_STEPS].set(bfc2)
    return p


# -------------------------------- pure-JAX reference --------------------------
def reference_forward(x, conv_w, conv_b, bn_gamma, bn_beta, bn_mean, bn_var,
                      w_ih, w_hh, b_ih, b_hh, fc_w, fc_b):
    xp = jnp.pad(x, ((0, 0), (1, 1), (0, 0)))
    y = jnp.zeros((x.shape[0], SEQ, C_OUT), jnp.float32)
    for k in range(K):
        y = y + jnp.einsum("blc,oc->blo", xp[:, k:k + SEQ, :], conv_w[:, :, k])
    y = y + conv_b[None, None, :]
    y = (y - bn_mean) / jnp.sqrt(bn_var + BN_EPS) * bn_gamma + bn_beta
    y = jnp.maximum(y, 0.0)
    y = jnp.maximum(y[:, 0::2, :], y[:, 1::2, :])                # MaxPool1d(2)
    h = jnp.zeros((x.shape[0], HID), jnp.float32)
    for t in range(y.shape[1]):
        xt = y[:, t, :]
        gi = xt @ w_ih.T + b_ih
        gh = h @ w_hh.T + b_hh
        r = jax.nn.sigmoid(gi[:, :HID] + gh[:, :HID])
        z = jax.nn.sigmoid(gi[:, HID:2 * HID] + gh[:, HID:2 * HID])
        n = jnp.tanh(gi[:, 2 * HID:] + r * gh[:, 2 * HID:])
        h = (1.0 - z) * n + z * h
    return h @ fc_w.T + fc_b[None, :]


if __name__ == "__main__":
    key = jax.random.PRNGKey(0)
    keys = jax.random.split(key, 12)

    def uni(k, shape, bound):
        return jax.random.uniform(k, shape, jnp.float32, -bound, bound)

    cb = 1.0 / (C_IN * K) ** 0.5
    conv_w = uni(keys[0], (C_OUT, C_IN, K), cb)
    conv_b = uni(keys[1], (C_OUT,), cb)
    bn_gamma = 1.0 + 0.1 * jax.random.normal(keys[2], (C_OUT,), jnp.float32)
    bn_beta = 0.1 * jax.random.normal(keys[3], (C_OUT,), jnp.float32)
    bn_mean = jnp.zeros((C_OUT,), jnp.float32)   # fresh running stats, eval mode
    bn_var = jnp.ones((C_OUT,), jnp.float32)

    gb = 1.0 / HID ** 0.5
    w_ih = uni(keys[4], (3 * HID, C_OUT), gb)    # gate order: r, z, n
    w_hh = uni(keys[5], (3 * HID, HID), gb)
    b_ih = uni(keys[6], (3 * HID,), gb)
    b_hh = uni(keys[7], (3 * HID,), gb)

    fc_w = uni(keys[8], (N_STEPS, HID), gb)
    fc_b = uni(keys[9], (N_STEPS,), gb)

    x = jax.random.normal(keys[10], (B, SEQ, C_IN), jnp.float32)

    params = pack_params(conv_w, conv_b, bn_gamma, bn_beta, bn_mean, bn_var,
                         w_ih, w_hh, b_ih, b_hh, fc_w, fc_b)

    out = forward(x, params)
    out = jax.block_until_ready(out)

    ref = reference_forward(x, conv_w, conv_b, bn_gamma, bn_beta, bn_mean, bn_var,
                            w_ih, w_hh, b_ih, b_hh, fc_w, fc_b)
    assert out.shape == (B, N_STEPS)
    assert jnp.allclose(out, ref, atol=1e-3, rtol=1e-3), (out, ref)
    print("KERNEL_OK")
</pallas_src>

<mosaic_0001>
module attributes {stable_mosaic.version = 11 : i64} {
  func.func @fused_kernel(%arg0: memref<9x16xf32, #tpu.memory_space<vmem>>, %arg1: memref<72x768xf32, #tpu.memory_space<vmem>>, %arg2: memref<2x8xf32, #tpu.memory_space<vmem>>) attributes {dimension_semantics = [], scalar_prefetch = 0 : i64, scratch_operands = 0 : i64, tpu.core_type = #tpu.core_type<tc>} {
    %c0 = arith.constant 0 : index
    %c0_0 = arith.constant 0 : index
    %0 = vector.load %arg1[%c0, %c0_0] : memref<72x768xf32, #tpu.memory_space<vmem>>, vector<64x192xf32>
    %c0_1 = arith.constant 0 : index
    %c256 = arith.constant 256 : index
    %1 = vector.load %arg1[%c0_1, %c256] : memref<72x768xf32, #tpu.memory_space<vmem>>, vector<64x192xf32>
    %c0_2 = arith.constant 0 : index
    %c512 = arith.constant 512 : index
    %2 = vector.load %arg1[%c0_2, %c512] : memref<72x768xf32, #tpu.memory_space<vmem>>, vector<24x64xf32>
    %c0_3 = arith.constant 0 : index
    %c640 = arith.constant 640 : index
    %3 = vector.load %arg1[%c0_3, %c640] : memref<72x768xf32, #tpu.memory_space<vmem>>, vector<64x16xf32>
    %c64 = arith.constant 64 : index
    %c0_4 = arith.constant 0 : index
    %4 = vector.load %arg1[%c64, %c0_4] : memref<72x768xf32, #tpu.memory_space<vmem>>, vector<1x64xf32>
    %c65 = arith.constant 65 : index
    %c0_5 = arith.constant 0 : index
    %5 = vector.load %arg1[%c65, %c0_5] : memref<72x768xf32, #tpu.memory_space<vmem>>, vector<1x192xf32>
    %c66 = arith.constant 66 : index
    %c0_6 = arith.constant 0 : index
    %6 = vector.load %arg1[%c66, %c0_6] : memref<72x768xf32, #tpu.memory_space<vmem>>, vector<1x64xf32>
    %c67 = arith.constant 67 : index
    %c0_7 = arith.constant 0 : index
    %7 = vector.load %arg1[%c67, %c0_7] : memref<72x768xf32, #tpu.memory_space<vmem>>, vector<1x16xf32>
    %c0_8 = arith.constant 0 : index
    %c0_9 = arith.constant 0 : index
    %8 = vector.load %arg0[%c0_8, %c0_9] : memref<9x16xf32, #tpu.memory_space<vmem>>, vector<8x16xf32>
    %c1 = arith.constant 1 : index
    %c0_10 = arith.constant 0 : index
    %9 = vector.load %arg0[%c1, %c0_10] : memref<9x16xf32, #tpu.memory_space<vmem>>, vector<8x16xf32>
    %10 = tpu.concatenate %8, %9 in 1 : vector<8x16xf32>, vector<8x16xf32> -> vector<8x32xf32>
    %11 = vector.extract_strided_slice %10 {offsets = [0, 0], sizes = [8, 24], strides = [1, 1]} : vector<8x32xf32> to vector<8x24xf32>
    %12 = vector.extract_strided_slice %10 {offsets = [0, 8], sizes = [8, 24], strides = [1, 1]} : vector<8x32xf32> to vector<8x24xf32>
    %cst = arith.constant dense<0.000000e+00> : vector<8x64xf32>
    %13 = tpu.matmul %11, %2, %cst {dimension_numbers = #tpu.dot_dimension_numbers<[1], [0], [0], [1], [0, 0, 1, 1], [], []>} : vector<8x24xf32>, vector<24x64xf32>, vector<8x64xf32> -> vector<8x64xf32>
    %14 = vector.broadcast %4 : vector<1x64xf32> to vector<8x64xf32>
    %15 = arith.addf %13, %14 : vector<8x64xf32>
    %cst_11 = arith.constant dense<0.000000e+00> : vector<8x64xf32>
    %16 = tpu.matmul %12, %2, %cst_11 {dimension_numbers = #tpu.dot_dimension_numbers<[1], [0], [0], [1], [0, 0, 1, 1], [], []>} : vector<8x24xf32>, vector<24x64xf32>, vector<8x64xf32> -> vector<8x64xf32>
    %17 = vector.broadcast %4 : vector<1x64xf32> to vector<8x64xf32>
    %18 = arith.addf %16, %17 : vector<8x64xf32>
    %19 = arith.maximumf %15, %18 : vector<8x64xf32>
    %cst_12 = arith.constant 0.000000e+00 : f32
    %20 = vector.broadcast %cst_12 : f32 to vector<8x64xf32>
    %21 = arith.maximumf %19, %20 : vector<8x64xf32>
    %cst_13 = arith.constant dense<0.000000e+00> : vector<8x192xf32>
    %22 = tpu.matmul %21, %0, %cst_13 {dimension_numbers = #tpu.dot_dimension_numbers<[1], [0], [0], [1], [0, 0, 1, 1], [], []>} : vector<8x64xf32>, vector<64x192xf32>, vector<8x192xf32> -> vector<8x192xf32>
    %23 = vector.broadcast %5 : vector<1x192xf32> to vector<8x192xf32>
    %24 = arith.addf %22, %23 : vector<8x192xf32>
    %25 = vector.extract_strided_slice %24 {offsets = [0, 0], sizes = [1, 192], strides = [1, 1]} : vector<8x192xf32> to vector<1x192xf32>
    %26 = vector.extract_strided_slice %25 {offsets = [0, 0], sizes = [1, 128], strides = [1, 1]} : vector<1x192xf32> to vector<1x128xf32>
    %27 = arith.negf %26 : vector<1x128xf32>
    %28 = math.exp %27 : vector<1x128xf32>
    %cst_14 = arith.constant 1.000000e+00 : f32
    %29 = vector.broadcast %cst_14 : f32 to vector<1x128xf32>
    %30 = arith.addf %29, %28 : vector<1x128xf32>
    %31 = arith.divf %29, %30 : vector<1x128xf32>
    %32 = vector.extract_strided_slice %31 {offsets = [0, 0], sizes = [1, 64], strides = [1, 1]} : vector<1x128xf32> to vector<1x64xf32>
    %33 = vector.extract_strided_slice %31 {offsets = [0, 64], sizes = [1, 64], strides = [1, 1]} : vector<1x128xf32> to vector<1x64xf32>
    %34 = vector.extract_strided_slice %25 {offsets = [0, 128], sizes = [1, 64], strides = [1, 1]} : vector<1x192xf32> to vector<1x64xf32>
    %35 = arith.mulf %32, %6 : vector<1x64xf32>
    %36 = arith.addf %34, %35 : vector<1x64xf32>
    %37 = math.tanh %36 : vector<1x64xf32>
    %cst_15 = arith.constant 1.000000e+00 : f32
    %38 = vector.broadcast %cst_15 : f32 to vector<1x64xf32>
    %39 = arith.subf %38, %33 : vector<1x64xf32>
    %40 = arith.mulf %39, %37 : vector<1x64xf32>
    %41 = vector.extract_strided_slice %24 {offsets = [1, 0], sizes = [1, 192], strides = [1, 1]} : vector<8x192xf32> to vector<1x192xf32>
    %cst_16 = arith.constant dense<0.000000e+00> : vector<1x192xf32>
    %42 = tpu.matmul %40, %1, %cst_16 {dimension_numbers = #tpu.dot_dimension_numbers<[1], [0], [0], [1], [0, 0, 1, 1], [], []>} : vector<1x64xf32>, vector<64x192xf32>, vector<1x192xf32> -> vector<1x192xf32>
    %43 = vector.extract_strided_slice %41 {offsets = [0, 0], sizes = [1, 128], strides = [1, 1]} : vector<1x192xf32> to vector<1x128xf32>
    %44 = vector.extract_strided_slice %42 {offsets = [0, 0], sizes = [1, 128], strides = [1, 1]} : vector<1x192xf32> to vector<1x128xf32>
    %45 = arith.addf %43, %44 : vector<1x128xf32>
    %46 = arith.negf %45 : vector<1x128xf32>
    %47 = math.exp %46 : vector<1x128xf32>
    %cst_17 = arith.constant 1.000000e+00 : f32
    %48 = vector.broadcast %cst_17 : f32 to vector<1x128xf32>
    %49 = arith.addf %48, %47 : vector<1x128xf32>
    %50 = arith.divf %48, %49 : vector<1x128xf32>
    %51 = vector.extract_strided_slice %50 {offsets = [0, 0], sizes = [1, 64], strides = [1, 1]} : vector<1x128xf32> to vector<1x64xf32>
    %52 = vector.extract_strided_slice %50 {offsets = [0, 64], sizes = [1, 64], strides = [1, 1]} : vector<1x128xf32> to vector<1x64xf32>
    %53 = vector.extract_strided_slice %41 {offsets = [0, 128], sizes = [1, 64], strides = [1, 1]} : vector<1x192xf32> to vector<1x64xf32>
    %54 = vector.extract_strided_slice %42 {offsets = [0, 128], sizes = [1, 64], strides = [1, 1]} : vector<1x192xf32> to vector<1x64xf32>
    %55 = arith.addf %54, %6 : vector<1x64xf32>
    %56 = arith.mulf %51, %55 : vector<1x64xf32>
    %57 = arith.addf %53, %56 : vector<1x64xf32>
    %58 = math.tanh %57 : vector<1x64xf32>
    %cst_18 = arith.constant 1.000000e+00 : f32
    %59 = vector.broadcast %cst_18 : f32 to vector<1x64xf32>
    %60 = arith.subf %59, %52 : vector<1x64xf32>
    %61 = arith.mulf %60, %58 : vector<1x64xf32>
    %62 = arith.mulf %52, %40 : vector<1x64xf32>
    %63 = arith.addf %61, %62 : vector<1x64xf32>
    %64 = vector.extract_strided_slice %24 {offsets = [2, 0], sizes = [1, 192], strides = [1, 1]} : vector<8x192xf32> to vector<1x192xf32>
    %cst_19 = arith.constant dense<0.000000e+00> : vector<1x192xf32>
    %65 = tpu.matmul %63, %1, %cst_19 {dimension_numbers = #tpu.dot_dimension_numbers<[1], [0], [0], [1], [0, 0, 1, 1], [], []>} : vector<1x64xf32>, vector<64x192xf32>, vector<1x192xf32> -> vector<1x192xf32>
    %66 = vector.extract_strided_slice %64 {offsets = [0, 0], sizes = [1, 128], strides = [1, 1]} : vector<1x192xf32> to vector<1x128xf32>
    %67 = vector.extract_strided_slice %65 {offsets = [0, 0], sizes = [1, 128], strides = [1, 1]} : vector<1x192xf32> to vector<1x128xf32>
    %68 = arith.addf %66, %67 : vector<1x128xf32>
    %69 = arith.negf %68 : vector<1x128xf32>
    %70 = math.exp %69 : vector<1x128xf32>
    %cst_20 = arith.constant 1.000000e+00 : f32
    %71 = vector.broadcast %cst_20 : f32 to vector<1x128xf32>
    %72 = arith.addf %71, %70 : vector<1x128xf32>
    %73 = arith.divf %71, %72 : vector<1x128xf32>
    %74 = vector.extract_strided_slice %73 {offsets = [0, 0], sizes = [1, 64], strides = [1, 1]} : vector<1x128xf32> to vector<1x64xf32>
    %75 = vector.extract_strided_slice %73 {offsets = [0, 64], sizes = [1, 64], strides = [1, 1]} : vector<1x128xf32> to vector<1x64xf32>
    %76 = vector.extract_strided_slice %64 {offsets = [0, 128], sizes = [1, 64], strides = [1, 1]} : vector<1x192xf32> to vector<1x64xf32>
    %77 = vector.extract_strided_slice %65 {offsets = [0, 128], sizes = [1, 64], strides = [1, 1]} : vector<1x192xf32> to vector<1x64xf32>
    %78 = arith.addf %77, %6 : vector<1x64xf32>
    %79 = arith.mulf %74, %78 : vector<1x64xf32>
    %80 = arith.addf %76, %79 : vector<1x64xf32>
    %81 = math.tanh %80 : vector<1x64xf32>
    %cst_21 = arith.constant 1.000000e+00 : f32
    %82 = vector.broadcast %cst_21 : f32 to vector<1x64xf32>
    %83 = arith.subf %82, %75 : vector<1x64xf32>
    %84 = arith.mulf %83, %81 : vector<1x64xf32>
    %85 = arith.mulf %75, %63 : vector<1x64xf32>
    %86 = arith.addf %84, %85 : vector<1x64xf32>
    %87 = vector.extract_strided_slice %24 {offsets = [3, 0], sizes = [1, 192], strides = [1, 1]} : vector<8x192xf32> to vector<1x192xf32>
    %cst_22 = arith.constant dense<0.000000e+00> : vector<1x192xf32>
    %88 = tpu.matmul %86, %1, %cst_22 {dimension_numbers = #tpu.dot_dimension_numbers<[1], [0], [0], [1], [0, 0, 1, 1], [], []>} : vector<1x64xf32>, vector<64x192xf32>, vector<1x192xf32> -> vector<1x192xf32>
    %89 = vector.extract_strided_slice %87 {offsets = [0, 0], sizes = [1, 128], strides = [1, 1]} : vector<1x192xf32> to vector<1x128xf32>
    %90 = vector.extract_strided_slice %88 {offsets = [0, 0], sizes = [1, 128], strides = [1, 1]} : vector<1x192xf32> to vector<1x128xf32>
    %91 = arith.addf %89, %90 : vector<1x128xf32>
    %92 = arith.negf %91 : vector<1x128xf32>
    %93 = math.exp %92 : vector<1x128xf32>
    %cst_23 = arith.constant 1.000000e+00 : f32
    %94 = vector.broadcast %cst_23 : f32 to vector<1x128xf32>
    %95 = arith.addf %94, %93 : vector<1x128xf32>
    %96 = arith.divf %94, %95 : vector<1x128xf32>
    %97 = vector.extract_strided_slice %96 {offsets = [0, 0], sizes = [1, 64], strides = [1, 1]} : vector<1x128xf32> to vector<1x64xf32>
    %98 = vector.extract_strided_slice %96 {offsets = [0, 64], sizes = [1, 64], strides = [1, 1]} : vector<1x128xf32> to vector<1x64xf32>
    %99 = vector.extract_strided_slice %87 {offsets = [0, 128], sizes = [1, 64], strides = [1, 1]} : vector<1x192xf32> to vector<1x64xf32>
    %100 = vector.extract_strided_slice %88 {offsets = [0, 128], sizes = [1, 64], strides = [1, 1]} : vector<1x192xf32> to vector<1x64xf32>
    %101 = arith.addf %100, %6 : vector<1x64xf32>
    %102 = arith.mulf %97, %101 : vector<1x64xf32>
    %103 = arith.addf %99, %102 : vector<1x64xf32>
    %104 = math.tanh %103 : vector<1x64xf32>
    %cst_24 = arith.constant 1.000000e+00 : f32
    %105 = vector.broadcast %cst_24 : f32 to vector<1x64xf32>
    %106 = arith.subf %105, %98 : vector<1x64xf32>
    %107 = arith.mulf %106, %104 : vector<1x64xf32>
    %108 = arith.mulf %98, %86 : vector<1x64xf32>
    %109 = arith.addf %107, %108 : vector<1x64xf32>
    %110 = vector.extract_strided_slice %24 {offsets = [4, 0], sizes = [1, 192], strides = [1, 1]} : vector<8x192xf32> to vector<1x192xf32>
    %cst_25 = arith.constant dense<0.000000e+00> : vector<1x192xf32>
    %111 = tpu.matmul %109, %1, %cst_25 {dimension_numbers = #tpu.dot_dimension_numbers<[1], [0], [0], [1], [0, 0, 1, 1], [], []>} : vector<1x64xf32>, vector<64x192xf32>, vector<1x192xf32> -> vector<1x192xf32>
    %112 = vector.extract_strided_slice %110 {offsets = [0, 0], sizes = [1, 128], strides = [1, 1]} : vector<1x192xf32> to vector<1x128xf32>
    %113 = vector.extract_strided_slice %111 {offsets = [0, 0], sizes = [1, 128], strides = [1, 1]} : vector<1x192xf32> to vector<1x128xf32>
    %114 = arith.addf %112, %113 : vector<1x128xf32>
    %115 = arith.negf %114 : vector<1x128xf32>
    %116 = math.exp %115 : vector<1x128xf32>
    %cst_26 = arith.constant 1.000000e+00 : f32
    %117 = vector.broadcast %cst_26 : f32 to vector<1x128xf32>
    %118 = arith.addf %117, %116 : vector<1x128xf32>
    %119 = arith.divf %117, %118 : vector<1x128xf32>
    %120 = vector.extract_strided_slice %119 {offsets = [0, 0], sizes = [1, 64], strides = [1, 1]} : vector<1x128xf32> to vector<1x64xf32>
    %121 = vector.extract_strided_slice %119 {offsets = [0, 64], sizes = [1, 64], strides = [1, 1]} : vector<1x128xf32> to vector<1x64xf32>
    %122 = vector.extract_strided_slice %110 {offsets = [0, 128], sizes = [1, 64], strides = [1, 1]} : vector<1x192xf32> to vector<1x64xf32>
    %123 = vector.extract_strided_slice %111 {offsets = [0, 128], sizes = [1, 64], strides = [1, 1]} : vector<1x192xf32> to vector<1x64xf32>
    %124 = arith.addf %123, %6 : vector<1x64xf32>
    %125 = arith.mulf %120, %124 : vector<1x64xf32>
    %126 = arith.addf %122, %125 : vector<1x64xf32>
    %127 = math.tanh %126 : vector<1x64xf32>
    %cst_27 = arith.constant 1.000000e+00 : f32
    %128 = vector.broadcast %cst_27 : f32 to vector<1x64xf32>
    %129 = arith.subf %128, %121 : vector<1x64xf32>
    %130 = arith.mulf %129, %127 : vector<1x64xf32>
    %131 = arith.mulf %121, %109 : vector<1x64xf32>
    %132 = arith.addf %130, %131 : vector<1x64xf32>
    %133 = vector.extract_strided_slice %24 {offsets = [5, 0], sizes = [1, 192], strides = [1, 1]} : vector<8x192xf32> to vector<1x192xf32>
    %cst_28 = arith.constant dense<0.000000e+00> : vector<1x192xf32>
    %134 = tpu.matmul %132, %1, %cst_28 {dimension_numbers = #tpu.dot_dimension_numbers<[1], [0], [0], [1], [0, 0, 1, 1], [], []>} : vector<1x64xf32>, vector<64x192xf32>, vector<1x192xf32> -> vector<1x192xf32>
    %135 = vector.extract_strided_slice %133 {offsets = [0, 0], sizes = [1, 128], strides = [1, 1]} : vector<1x192xf32> to vector<1x128xf32>
    %136 = vector.extract_strided_slice %134 {offsets = [0, 0], sizes = [1, 128], strides = [1, 1]} : vector<1x192xf32> to vector<1x128xf32>
    %137 = arith.addf %135, %136 : vector<1x128xf32>
    %138 = arith.negf %137 : vector<1x128xf32>
    %139 = math.exp %138 : vector<1x128xf32>
    %cst_29 = arith.constant 1.000000e+00 : f32
    %140 = vector.broadcast %cst_29 : f32 to vector<1x128xf32>
    %141 = arith.addf %140, %139 : vector<1x128xf32>
    %142 = arith.divf %140, %141 : vector<1x128xf32>
    %143 = vector.extract_strided_slice %142 {offsets = [0, 0], sizes = [1, 64], strides = [1, 1]} : vector<1x128xf32> to vector<1x64xf32>
    %144 = vector.extract_strided_slice %142 {offsets = [0, 64], sizes = [1, 64], strides = [1, 1]} : vector<1x128xf32> to vector<1x64xf32>
    %145 = vector.extract_strided_slice %133 {offsets = [0, 128], sizes = [1, 64], strides = [1, 1]} : vector<1x192xf32> to vector<1x64xf32>
    %146 = vector.extract_strided_slice %134 {offsets = [0, 128], sizes = [1, 64], strides = [1, 1]} : vector<1x192xf32> to vector<1x64xf32>
    %147 = arith.addf %146, %6 : vector<1x64xf32>
    %148 = arith.mulf %143, %147 : vector<1x64xf32>
    %149 = arith.addf %145, %148 : vector<1x64xf32>
    %150 = math.tanh %149 : vector<1x64xf32>
    %cst_30 = arith.constant 1.000000e+00 : f32
    %151 = vector.broadcast %cst_30 : f32 to vector<1x64xf32>
    %152 = arith.subf %151, %144 : vector<1x64xf32>
    %153 = arith.mulf %152, %150 : vector<1x64xf32>
    %154 = arith.mulf %144, %132 : vector<1x64xf32>
    %155 = arith.addf %153, %154 : vector<1x64xf32>
    %156 = vector.extract_strided_slice %24 {offsets = [6, 0], sizes = [1, 192], strides = [1, 1]} : vector<8x192xf32> to vector<1x192xf32>
    %cst_31 = arith.constant dense<0.000000e+00> : vector<1x192xf32>
    %157 = tpu.matmul %155, %1, %cst_31 {dimension_numbers = #tpu.dot_dimension_numbers<[1], [0], [0], [1], [0, 0, 1, 1], [], []>} : vector<1x64xf32>, vector<64x192xf32>, vector<1x192xf32> -> vector<1x192xf32>
    %158 = vector.extract_strided_slice %156 {offsets = [0, 0], sizes = [1, 128], strides = [1, 1]} : vector<1x192xf32> to vector<1x128xf32>
    %159 = vector.extract_strided_slice %157 {offsets = [0, 0], sizes = [1, 128], strides = [1, 1]} : vector<1x192xf32> to vector<1x128xf32>
    %160 = arith.addf %158, %159 : vector<1x128xf32>
    %161 = arith.negf %160 : vector<1x128xf32>
    %162 = math.exp %161 : vector<1x128xf32>
    %cst_32 = arith.constant 1.000000e+00 : f32
    %163 = vector.broadcast %cst_32 : f32 to vector<1x128xf32>
    %164 = arith.addf %163, %162 : vector<1x128xf32>
    %165 = arith.divf %163, %164 : vector<1x128xf32>
    %166 = vector.extract_strided_slice %165 {offsets = [0, 0], sizes = [1, 64], strides = [1, 1]} : vector<1x128xf32> to vector<1x64xf32>
    %167 = vector.extract_strided_slice %165 {offsets = [0, 64], sizes = [1, 64], strides = [1, 1]} : vector<1x128xf32> to vector<1x64xf32>
    %168 = vector.extract_strided_slice %156 {offsets = [0, 128], sizes = [1, 64], strides = [1, 1]} : vector<1x192xf32> to vector<1x64xf32>
    %169 = vector.extract_strided_slice %157 {offsets = [0, 128], sizes = [1, 64], strides = [1, 1]} : vector<1x192xf32> to vector<1x64xf32>
    %170 = arith.addf %169, %6 : vector<1x64xf32>
    %171 = arith.mulf %166, %170 : vector<1x64xf32>
    %172 = arith.addf %168, %171 : vector<1x64xf32>
    %173 = math.tanh %172 : vector<1x64xf32>
    %cst_33 = arith.constant 1.000000e+00 : f32
    %174 = vector.broadcast %cst_33 : f32 to vector<1x64xf32>
    %175 = arith.subf %174, %167 : vector<1x64xf32>
    %176 = arith.mulf %175, %173 : vector<1x64xf32>
    %177 = arith.mulf %167, %155 : vector<1x64xf32>
    %178 = arith.addf %176, %177 : vector<1x64xf32>
    %179 = vector.extract_strided_slice %24 {offsets = [7, 0], sizes = [1, 192], strides = [1, 1]} : vector<8x192xf32> to vector<1x192xf32>
    %cst_34 = arith.constant dense<0.000000e+00> : vector<1x192xf32>
    %180 = tpu.matmul %178, %1, %cst_34 {dimension_numbers = #tpu.dot_dimension_numbers<[1], [0], [0], [1], [0, 0, 1, 1], [], []>} : vector<1x64xf32>, vector<64x192xf32>, vector<1x192xf32> -> vector<1x192xf32>
    %181 = vector.extract_strided_slice %179 {offsets = [0, 0], sizes = [1, 128], strides = [1, 1]} : vector<1x192xf32> to vector<1x128xf32>
    %182 = vector.extract_strided_slice %180 {offsets = [0, 0], sizes = [1, 128], strides = [1, 1]} : vector<1x192xf32> to vector<1x128xf32>
    %183 = arith.addf %181, %182 : vector<1x128xf32>
    %184 = arith.negf %183 : vector<1x128xf32>
    %185 = math.exp %184 : vector<1x128xf32>
    %cst_35 = arith.constant 1.000000e+00 : f32
    %186 = vector.broadcast %cst_35 : f32 to vector<1x128xf32>
    %187 = arith.addf %186, %185 : vector<1x128xf32>
    %188 = arith.divf %186, %187 : vector<1x128xf32>
    %189 = vector.extract_strided_slice %188 {offsets = [0, 0], sizes = [1, 64], strides = [1, 1]} : vector<1x128xf32> to vector<1x64xf32>
    %190 = vector.extract_strided_slice %188 {offsets = [0, 64], sizes = [1, 64], strides = [1, 1]} : vector<1x128xf32> to vector<1x64xf32>
    %191 = vector.extract_strided_slice %179 {offsets = [0, 128], sizes = [1, 64], strides = [1, 1]} : vector<1x192xf32> to vector<1x64xf32>
    %192 = vector.extract_strided_slice %180 {offsets = [0, 128], sizes = [1, 64], strides = [1, 1]} : vector<1x192xf32> to vector<1x64xf32>
    %193 = arith.addf %192, %6 : vector<1x64xf32>
    %194 = arith.mulf %189, %193 : vector<1x64xf32>
    %195 = arith.addf %191, %194 : vector<1x64xf32>
    %196 = math.tanh %195 : vector<1x64xf32>
    %cst_36 = arith.constant 1.000000e+00 : f32
    %197 = vector.broadcast %cst_36 : f32 to vector<1x64xf32>
    %198 = arith.subf %197, %190 : vector<1x64xf32>
    %199 = arith.mulf %198, %196 : vector<1x64xf32>
    %200 = arith.mulf %190, %178 : vector<1x64xf32>
    %201 = arith.addf %199, %200 : vector<1x64xf32>
    %cst_37 = arith.constant dense<0.000000e+00> : vector<1x16xf32>
    %202 = tpu.matmul %201, %3, %cst_37 {dimension_numbers = #tpu.dot_dimension_numbers<[1], [0], [0], [1], [0, 0, 1, 1], [], []>} : vector<1x64xf32>, vector<64x16xf32>, vector<1x16xf32> -> vector<1x16xf32>
    %203 = arith.addf %202, %7 : vector<1x16xf32>
    %204 = vector.extract_strided_slice %203 {offsets = [0, 0], sizes = [1, 8], strides = [1, 1]} : vector<1x16xf32> to vector<1x8xf32>
    %c0_38 = arith.constant 0 : index
    %c0_39 = arith.constant 0 : index
    %205 = vector.load %arg2[%c0_38, %c0_39] : memref<2x8xf32, #tpu.memory_space<vmem>>, vector<1x8xf32>
    tpu.vector_store %arg2[%c0_38, %c0_39], %204 {strides = array<i32>} : memref<2x8xf32, #tpu.memory_space<vmem>>, vector<1x8xf32>,
    %206 = vector.extract_strided_slice %203 {offsets = [0, 8], sizes = [1, 8], strides = [1, 1]} : vector<1x16xf32> to vector<1x8xf32>
    %c1_40 = arith.constant 1 : index
    %c0_41 = arith.constant 0 : index
    %207 = vector.load %arg2[%c1_40, %c0_41] : memref<2x8xf32, #tpu.memory_space<vmem>>, vector<1x8xf32>
    tpu.vector_store %arg2[%c1_40, %c0_41], %206 {strides = array<i32>} : memref<2x8xf32, #tpu.memory_space<vmem>>, vector<1x8xf32>,
    return
  }
}

</mosaic_0001>

<llo_original>
// kernel: forward.1
$region0: #{forward.1}
  #allocation0 [shape = 'u32[]', space=smem, size = 0x4, offset = 0x4, fixed_abs, tag = 'smem constant byte address 0x4 - core index']
  #allocation1 [shape = 'u32[144,128]{1,0:T(1,128)}', space=vmem, size = 0x12000, scoped, tag = 'internal scratch']
  %s0 = inlined_call_operand.vmem [shape: f32[9,16], index: 0, kind: input, shape index: {}]
  %s1 = inlined_call_operand.hbm [shape: f32[72,768], index: 1, kind: input, shape index: {}]
  %s2 = inlined_call_operand.hbm [shape: f32[2,8], index: 2, kind: output, shape index: {}]
  %s3 = sld [smem:[#allocation0]]
  $region22: #{forward.1} parent=0
    _
  %s5 = ssub.s32 1, %s3
  %s6 = scalar_select 0, %s5, %s3
  $region1: #{forward.1} parent=0
    #allocation2 [shape = 'u8[221184]{0}', space=vmem, size = 0x36000, scoped, tag = 'input window, operand 1, single buffered']
    #allocation3 [shape = 's32[1]{0}', space=sflag, size = 0x4, scoped, tag = 'scoped memory for forward.1']
    #allocation4 [shape = 's32[1]{0}', space=sflag, size = 0x4, scoped, tag = 'scoped memory for forward.1']
    #allocation5 [shape = 'u8[1024]{0}', space=vmem, size = 0x400, scoped, tag = 'output window, operand 0, single buffered']
    %7 = vsyncpa [#allocation3], 0
    %8 = vsyncpa [#allocation4], 0
    // Predicated region
    $region2: #{forward.1} parent=1 // pred_check
      _
    $region3: #{forward.1} parent=1 // pred_check_branch
      %10 = sbr.rel (0) target = $region5
    $region4: #{forward.1} parent=1 // pred_region
      _
    $region5: #{forward.1} parent=1 // pred_fallthru
      _
    // Predicated region
    $region6: #{forward.1} parent=1 // pred_check
      _
    $region7: #{forward.1} parent=1 // pred_check_branch
      %12 = sbr.rel (0) target = $region9
    $region8: #{forward.1} parent=1 // pred_region
      %s14 = ssub.s32 6912, 6912
      %15 = vsyncadd [#allocation3], %s14
      %s16 = sshll.u32 [#allocation2], 4
      %s17 = int_to_ptr.vmem [resolvable:$true] %s16
      %22 = dma.hbm_to_vmem [thread:$0]  %s1, 6912, %s17, [#allocation3], 768, 768, 48
    $region9: #{forward.1} parent=1 // pred_fallthru
      _
    // Predicated region
    $region10: #{forward.1} parent=1 // pred_check
      _
    $region11: #{forward.1} parent=1 // pred_check_branch
      %24 = sbr.rel (0) target = $region13
    $region12: #{forward.1} parent=1 // pred_region
      %25 = dma.done [#allocation3], 6912
    $region13: #{forward.1} parent=1 // pred_fallthru
      _
    %v26 = vld [vmem:[#allocation2] sm:$0xff]
    %v27 = vld [vmem:[#allocation2 + $0x8] sm:$0xff]
    %v28 = vld [vmem:[#allocation2 + $0x30] sm:$0xff]
    %v29 = vld [vmem:[#allocation2 + $0x38] sm:$0xff]
    %v30 = vld [vmem:[#allocation2 + $0x60] sm:$0xff]
    %v31 = vld [vmem:[#allocation2 + $0x68] sm:$0xff]
    %v32 = vld [vmem:[#allocation2 + $0x90] sm:$0xff]
    %v33 = vld [vmem:[#allocation2 + $0x98] sm:$0xff]
    %v34 = vld [vmem:[#allocation2 + $0xc0] sm:$0xff]
    %v35 = vld [vmem:[#allocation2 + $0xc8] sm:$0xff]
    %v36 = vld [vmem:[#allocation2 + $0xf0] sm:$0xff]
    %v37 = vld [vmem:[#allocation2 + $0xf8] sm:$0xff]
    %v38 = vld [vmem:[#allocation2 + $0x120] sm:$0xff]
    %v39 = vld [vmem:[#allocation2 + $0x128] sm:$0xff]
    %v40 = vld [vmem:[#allocation2 + $0x150] sm:$0xff]
    %v41 = vld [vmem:[#allocation2 + $0x158] sm:$0xff]
    %v42 = vld [vmem:[#allocation2 + $0x10] sm:$0xff]
    %v43 = vld [vmem:[#allocation2 + $0x18] sm:$0xff]
    %v44 = vld [vmem:[#allocation2 + $0x40] sm:$0xff]
    %v45 = vld [vmem:[#allocation2 + $0x48] sm:$0xff]
    %v46 = vld [vmem:[#allocation2 + $0x70] sm:$0xff]
    %v47 = vld [vmem:[#allocation2 + $0x78] sm:$0xff]
    %v48 = vld [vmem:[#allocation2 + $0xa0] sm:$0xff]
    %v49 = vld [vmem:[#allocation2 + $0xa8] sm:$0xff]
    %v50 = vld [vmem:[#allocation2 + $0xd0] sm:$0xff]
    %v51 = vld [vmem:[#allocation2 + $0xd8] sm:$0xff]
    %v52 = vld [vmem:[#allocation2 + $0x100] sm:$0xff]
    %v53 = vld [vmem:[#allocation2 + $0x108] sm:$0xff]
    %v54 = vld [vmem:[#allocation2 + $0x130] sm:$0xff]
    %v55 = vld [vmem:[#allocation2 + $0x138] sm:$0xff]
    %v56 = vld [vmem:[#allocation2 + $0x160] sm:$0xff]
    %v57 = vld [vmem:[#allocation2 + $0x168] sm:$0xff]
    %v58 = vld [vmem:[#allocation2 + $0x20] sm:$0xff]
    %v59 = vld [vmem:[#allocation2 + $0x50] sm:$0xff]
    %v60 = vld [vmem:[#allocation2 + $0x80] sm:$0xff]
    %v61 = vld [vmem:[#allocation2 + $0x28] sm:$0xff]
    %v62 = vld [vmem:[#allocation2 + $0x58] sm:$0xff]
    %v63 = vld [vmem:[#allocation2 + $0x88] sm:$0xff]
    %v64 = vld [vmem:[#allocation2 + $0xb8] sm:$0xff]
    %v65 = vld [vmem:[#allocation2 + $0xe8] sm:$0xff]
    %v66 = vld [vmem:[#allocation2 + $0x118] sm:$0xff]
    %v67 = vld [vmem:[#allocation2 + $0x148] sm:$0xff]
    %v68 = vld [vmem:[#allocation2 + $0x178] sm:$0xff]
    %v69 = vld [vmem:[#allocation2 + $0x180] ss:$0 sm:$0xff]
    %s70 = scalar_lea.vmem [#allocation2], 385
    %v71 = vld [vmem:[%s70] ss:$8 sm:$0x3]
    %v72 = vld [vmem:[#allocation2 + $0x182] ss:$0 sm:$0xff]
    %v73 = vld [vmem:[#allocation2 + $0x183] ss:$0 sm:$0xff]
    %v74 = vld [vmem:[%s0] sm:$0xff]
    %v75 = vld [vmem:[%s0 + $0x1] sm:$0xff]
    %77 = vrot.lane.b32.xlu0 %v75, 16
    %v78 = vpop.permute.xlu0 %77
    %vm80 = vcmask 130048
    %v81 = vsel %vm80, %v74, %v78
    %vm82 = vcmask 195584
    %v84 = vsel %vm82, %v81, 0
    %86 = vmatprep.subr.mxu0 0.0
    %87 = vmatpush1.msra.mxu0 %v58
    %88 = vmatprep.subr.mxu0 0.0
    %89 = vmatpush1.msra.mxu0 %v59
    %90 = vmatprep.subr.mxu0 0.0
    %91 = vmatpush1.msra.mxu0 %v60
    %92 = vmatprep.subr.mxu0 0.0
    %93 = vmatpush1.msra.mxu0 0.0
    %94 = vmatprep.subr.mxu0 0.0
    %95 = vmatpush1.msra.mxu0 0.0
    %96 = vmatprep.subr.mxu0 0.0
    %97 = vmatpush1.msra.mxu0 0.0
    %98 = vmatprep.subr.mxu0 0.0
    %99 = vmatpush1.msra.mxu0 0.0
    %100 = vmatprep.subr.mxu0 0.0
    %101 = vmatpush1.msra.mxu0 0.0
    %102 = vmatprep.subr.mxu0 0.0
    %103 = vmatpush1.msra.mxu0 0.0
    %104 = vmatprep.subr.mxu0 0.0
    %105 = vmatpush1.msra.mxu0 0.0
    %106 = vmatprep.subr.mxu0 0.0
    %107 = vmatpush1.msra.mxu0 0.0
    %108 = vmatprep.subr.mxu0 0.0
    %109 = vmatpush1.msra.mxu0 0.0
    %110 = vmatprep.subr.mxu0 0.0
    %111 = vmatpush1.msra.mxu0 0.0
    %112 = vmatprep.subr.mxu0 0.0
    %113 = vmatpush1.msra.mxu0 0.0
    %114 = vmatprep.subr.mxu0 0.0
    %115 = vmatpush1.msra.mxu0 0.0
    %116 = vmatprep.subr.mxu0 0.0
    %117 = vmatpush1.msra.mxu0 0.0
    %118 = vmatprep.subr.mxu0 0.0
    %119 = vmatpush1.msra.mxu0 0.0
    %120 = vmatprep.subr.mxu0 0.0
    %121 = vmatpush1.msra.mxu0 0.0
    %122 = vmatprep.subr.mxu0 0.0
    %123 = vmatpush1.msra.mxu0 0.0
    %124 = vmatprep.subr.mxu0 0.0
    %125 = vmatpush1.msra.mxu0 0.0
    %126 = vmatprep.subr.mxu0 0.0
    %127 = vmatpush1.msra.mxu0 0.0
    %128 = vmatprep.subr.mxu0 0.0
    %129 = vmatpush1.msra.mxu0 0.0
    %130 = vmatprep.subr.mxu0 0.0
    %131 = vmatpush1.msra.mxu0 0.0
    %132 = vmatprep.subr.mxu0 0.0
    %133 = vmatpush1.msra.mxu0 0.0
    %134 = vmatprep.subr.mxu0 0.0
    %135 = vmatpush1.msra.mxu0 0.0
    %136 = vmatprep.subr.mxu0 0.0
    %137 = vmatpush1.msra.mxu0 0.0
    %138 = vmatprep.subr.mxu0 0.0
    %139 = vmatpush1.msra.mxu0 0.0
    %140 = vmatprep.subr.mxu0 0.0
    %141 = vmatpush1.msra.mxu0 0.0
    %142 = vmatprep.subr.mxu0 0.0
    %143 = vmatpush1.msra.mxu0 0.0
    %144 = vmatprep.subr.mxu0 0.0
    %145 = vmatpush1.msra.mxu0 0.0
    %146 = vmatprep.subr.mxu0 0.0
    %147 = vmatpush1.msra.mxu0 0.0
    %148 = vmatprep.subr.mxu0 0.0
    %149 = vmatpush1.msra.mxu0 0.0
    %150 = vmatprep.mubr.f32.mxu0 0.0
    %151 = vmatmul.mubr.f32.gmra.mrb[0].mxu0 %v84
    %v152 = vpop.f32.mrb[0].mxu0
    %v153 = vadd.f32 %v69, %v152
    %v154 = vpop.f32.mrb[0].mxu0
    %155 = vdwg.mxu0
    %156 = vrot.lane.b32.xlu0 %v81, 120
    %v157 = vpop.permute.xlu0 %156
    %v158 = vsel %vm82, %v157, 0
    %160 = vmatprep.subr.mxu0 0.0
    %161 = vmatpush1.msra.mxu0 %v58
    %162 = vmatprep.subr.mxu0 0.0
    %163 = vmatpush1.msra.mxu0 %v59
    %164 = vmatprep.subr.mxu0 0.0
    %165 = vmatpush1.msra.mxu0 %v60
    %166 = vmatprep.subr.mxu0 0.0
    %167 = vmatpush1.msra.mxu0 0.0
    %168 = vmatprep.subr.mxu0 0.0
    %169 = vmatpush1.msra.mxu0 0.0
    %170 = vmatprep.subr.mxu0 0.0
    %171 = vmatpush1.msra.mxu0 0.0
    %172 = vmatprep.subr.mxu0 0.0
    %173 = vmatpush1.msra.mxu0 0.0
    %174 = vmatprep.subr.mxu0 0.0
    %175 = vmatpush1.msra.mxu0 0.0
    %176 = vmatprep.subr.mxu0 0.0
    %177 = vmatpush1.msra.mxu0 0.0
    %178 = vmatprep.subr.mxu0 0.0
    %179 = vmatpush1.msra.mxu0 0.0
    %180 = vmatprep.subr.mxu0 0.0
    %181 = vmatpush1.msra.mxu0 0.0
    %182 = vmatprep.subr.mxu0 0.0
    %183 = vmatpush1.msra.mxu0 0.0
    %184 = vmatprep.subr.mxu0 0.0
    %185 = vmatpush1.msra.mxu0 0.0
    %186 = vmatprep.subr.mxu0 0.0
    %187 = vmatpush1.msra.mxu0 0.0
    %188 = vmatprep.subr.mxu0 0.0
    %189 = vmatpush1.msra.mxu0 0.0
    %190 = vmatprep.subr.mxu0 0.0
    %191 = vmatpush1.msra.mxu0 0.0
    %192 = vmatprep.subr.mxu0 0.0
    %193 = vmatpush1.msra.mxu0 0.0
    %194 = vmatprep.subr.mxu0 0.0
    %195 = vmatpush1.msra.mxu0 0.0
    %196 = vmatprep.subr.mxu0 0.0
    %197 = vmatpush1.msra.mxu0 0.0
    %198 = vmatprep.subr.mxu0 0.0
    %199 = vmatpush1.msra.mxu0 0.0
    %200 = vmatprep.subr.mxu0 0.0
    %201 = vmatpush1.msra.mxu0 0.0
    %202 = vmatprep.subr.mxu0 0.0
    %203 = vmatpush1.msra.mxu0 0.0
    %204 = vmatprep.subr.mxu0 0.0
    %205 = vmatpush1.msra.mxu0 0.0
    %206 = vmatprep.subr.mxu0 0.0
    %207 = vmatpush1.msra.mxu0 0.0
    %208 = vmatprep.subr.mxu0 0.0
    %209 = vmatpush1.msra.mxu0 0.0
    %210 = vmatprep.subr.mxu0 0.0
    %211 = vmatpush1.msra.mxu0 0.0
    %212 = vmatprep.subr.mxu0 0.0
    %213 = vmatpush1.msra.mxu0 0.0
    %214 = vmatprep.subr.mxu0 0.0
    %215 = vmatpush1.msra.mxu0 0.0
    %216 = vmatprep.subr.mxu0 0.0
    %217 = vmatpush1.msra.mxu0 0.0
    %218 = vmatprep.subr.mxu0 0.0
    %219 = vmatpush1.msra.mxu0 0.0
    %220 = vmatprep.subr.mxu0 0.0
    %221 = vmatpush1.msra.mxu0 0.0
    %222 = vmatprep.subr.mxu0 0.0
    %223 = vmatpush1.msra.mxu0 0.0
    %224 = vmatprep.mubr.f32.mxu0 0.0
    %225 = vmatmul.mubr.f32.gmra.mrb[0].mxu0 %v158
    %v226 = vpop.f32.mrb[0].mxu0
    %v227 = vadd.f32 %v69, %v226
    %v228 = vpop.f32.mrb[0].mxu0
    %229 = vdwg.mxu0
    %v230 = vmax.f32 %v153, %v227
    %v231 = vmax.f32 %v230, 0.0
    %v233 = vlaneseq
    %v234 = vshrl.u32 %v233, 7
    %v235 = vsub.s32 0, %v234
    %v236 = vrot.slane %v71, %v235
    %v237 = vlaneseq
    %v238 = vshrl.u32 %v237, 7
    %v239 = vsub.s32 1, %v238
    %v240 = vrot.slane %v71, %v239
    %vm243 = vcmask 523264
    %v245 = vsel %vm243, %v231, 0
    %247 = vmatprep.subr.mxu0 %v27
    %248 = vmatpush1.msra.mxu0 %v26
    %249 = vmatprep.subr.mxu0 %v29
    %250 = vmatpush1.msra.mxu0 %v28
    %251 = vmatprep.subr.mxu0 %v31
    %252 = vmatpush1.msra.mxu0 %v30
    %253 = vmatprep.subr.mxu0 %v33
    %254 = vmatpush1.msra.mxu0 %v32
    %255 = vmatprep.subr.mxu0 %v35
    %256 = vmatpush1.msra.mxu0 %v34
    %257 = vmatprep.subr.mxu0 %v37
    %258 = vmatpush1.msra.mxu0 %v36
    %259 = vmatprep.subr.mxu0 %v39
    %260 = vmatpush1.msra.mxu0 %v38
    %261 = vmatprep.subr.mxu0 %v41
    %262 = vmatpush1.msra.mxu0 %v40
    %263 = vmatprep.subr.mxu0 0.0
    %264 = vmatpush1.msra.mxu0 0.0
    %265 = vmatprep.subr.mxu0 0.0
    %266 = vmatpush1.msra.mxu0 0.0
    %267 = vmatprep.subr.mxu0 0.0
    %268 = vmatpush1.msra.mxu0 0.0
    %269 = vmatprep.subr.mxu0 0.0
    %270 = vmatpush1.msra.mxu0 0.0
    %271 = vmatprep.subr.mxu0 0.0
    %272 = vmatpush1.msra.mxu0 0.0
    %273 = vmatprep.subr.mxu0 0.0
    %274 = vmatpush1.msra.mxu0 0.0
    %275 = vmatprep.subr.mxu0 0.0
    %276 = vmatpush1.msra.mxu0 0.0
    %277 = vmatprep.subr.mxu0 0.0
    %278 = vmatpush1.msra.mxu0 0.0
    %279 = vmatprep.subr.mxu0 0.0
    %280 = vmatpush1.msra.mxu0 0.0
    %281 = vmatprep.subr.mxu0 0.0
    %282 = vmatpush1.msra.mxu0 0.0
    %283 = vmatprep.subr.mxu0 0.0
    %284 = vmatpush1.msra.mxu0 0.0
    %285 = vmatprep.subr.mxu0 0.0
    %286 = vmatpush1.msra.mxu0 0.0
    %287 = vmatprep.subr.mxu0 0.0
    %288 = vmatpush1.msra.mxu0 0.0
    %289 = vmatprep.subr.mxu0 0.0
    %290 = vmatpush1.msra.mxu0 0.0
    %291 = vmatprep.subr.mxu0 0.0
    %292 = vmatpush1.msra.mxu0 0.0
    %293 = vmatprep.subr.mxu0 0.0
    %294 = vmatpush1.msra.mxu0 0.0
    %295 = vmatprep.subr.mxu0 0.0
    %296 = vmatpush1.msra.mxu0 0.0
    %297 = vmatprep.subr.mxu0 0.0
    %298 = vmatpush1.msra.mxu0 0.0
    %299 = vmatprep.subr.mxu0 0.0
    %300 = vmatpush1.msra.mxu0 0.0
    %301 = vmatprep.subr.mxu0 0.0
    %302 = vmatpush1.msra.mxu0 0.0
    %303 = vmatprep.subr.mxu0 0.0
    %304 = vmatpush1.msra.mxu0 0.0
    %305 = vmatprep.subr.mxu0 0.0
    %306 = vmatpush1.msra.mxu0 0.0
    %307 = vmatprep.subr.mxu0 0.0
    %308 = vmatpush1.msra.mxu0 0.0
    %309 = vmatprep.subr.mxu0 0.0
    %310 = vmatpush1.msra.mxu0 0.0
    %311 = vmatprep.mubr.f32.mxu0 0.0
    %312 = vmatmul.mubr.f32.gmra.mrb[0].mxu0 %v245
    %v313 = vpop.f32.mrb[0].mxu0
    %v314 = vadd.f32 %v236, %v313
    %v315 = vpop.f32.mrb[0].mxu0
    %v316 = vadd.f32 %v240, %v315
    %317 = vdwg.mxu0
    %v318 = vxor.u32 %v314, 2147483648
    %v319 = vmul.f32 %v318, 1.442695
    %v320 = vpow.pop %v319
    %v321 = vadd.f32 %v320, 1.0
    %v322 = vrcp.pop %v321
    %v323 = vmul.f32 1.0, %v322
    %v324 = vmul.f32 %v323, %v72
    %v325 = vadd.f32 %v316, %v324
    %v326 = vtanh.pop %v325
    %v327 = vsub.f32 1.0, %v323
    %329 = vrot.lane.b32.xlu0 %v326, 64
    %v330 = vpop.permute.xlu0 %329
    %v332 = vmul.f32 %v327, %v330
    %334 = vrot.lane.b32.xlu0 %v332, 64
    %v335 = vpop.permute.xlu0 %334
    %v336 = vsel %vm243, %v335, 0
    %338 = vmatprep.subr.mxu0 %v43
    %339 = vmatpush1.msra.mxu0 %v42
    %340 = vmatprep.subr.mxu0 %v45
    %341 = vmatpush1.msra.mxu0 %v44
    %342 = vmatprep.subr.mxu0 %v47
    %343 = vmatpush1.msra.mxu0 %v46
    %344 = vmatprep.subr.mxu0 %v49
    %345 = vmatpush1.msra.mxu0 %v48
    %346 = vmatprep.subr.mxu0 %v51
    %347 = vmatpush1.msra.mxu0 %v50
    %348 = vmatprep.subr.mxu0 %v53
    %349 = vmatpush1.msra.mxu0 %v52
    %350 = vmatprep.subr.mxu0 %v55
    %351 = vmatpush1.msra.mxu0 %v54
    %352 = vmatprep.subr.mxu0 %v57
    %353 = vmatpush1.msra.mxu0 %v56
    %354 = vmatprep.subr.mxu0 0.0
    %355 = vmatpush1.msra.mxu0 0.0
    %356 = vmatprep.subr.mxu0 0.0
    %357 = vmatpush1.msra.mxu0 0.0
    %358 = vmatprep.subr.mxu0 0.0
    %359 = vmatpush1.msra.mxu0 0.0
    %360 = vmatprep.subr.mxu0 0.0
    %361 = vmatpush1.msra.mxu0 0.0
    %362 = vmatprep.subr.mxu0 0.0
    %363 = vmatpush1.msra.mxu0 0.0
    %364 = vmatprep.subr.mxu0 0.0
    %365 = vmatpush1.msra.mxu0 0.0
    %366 = vmatprep.subr.mxu0 0.0
    %367 = vmatpush1.msra.mxu0 0.0
    %368 = vmatprep.subr.mxu0 0.0
    %369 = vmatpush1.msra.mxu0 0.0
    %370 = vmatprep.subr.mxu0 0.0
    %371 = vmatpush1.msra.mxu0 0.0
    %372 = vmatprep.subr.mxu0 0.0
    %373 = vmatpush1.msra.mxu0 0.0
    %374 = vmatprep.subr.mxu0 0.0
    %375 = vmatpush1.msra.mxu0 0.0
    %376 = vmatprep.subr.mxu0 0.0
    %377 = vmatpush1.msra.mxu0 0.0
    %378 = vmatprep.subr.mxu0 0.0
    %379 = vmatpush1.msra.mxu0 0.0
    %380 = vmatprep.subr.mxu0 0.0
    %381 = vmatpush1.msra.mxu0 0.0
    %382 = vmatprep.subr.mxu0 0.0
    %383 = vmatpush1.msra.mxu0 0.0
    %384 = vmatprep.subr.mxu0 0.0
    %385 = vmatpush1.msra.mxu0 0.0
    %386 = vmatprep.subr.mxu0 0.0
    %387 = vmatpush1.msra.mxu0 0.0
    %388 = vmatprep.subr.mxu0 0.0
    %389 = vmatpush1.msra.mxu0 0.0
    %390 = vmatprep.subr.mxu0 0.0
    %391 = vmatpush1.msra.mxu0 0.0
    %392 = vmatprep.subr.mxu0 0.0
    %393 = vmatpush1.msra.mxu0 0.0
    %394 = vmatprep.subr.mxu0 0.0
    %395 = vmatpush1.msra.mxu0 0.0
    %396 = vmatprep.subr.mxu0 0.0
    %397 = vmatpush1.msra.mxu0 0.0
    %398 = vmatprep.subr.mxu0 0.0
    %399 = vmatpush1.msra.mxu0 0.0
    %400 = vmatprep.subr.mxu0 0.0
    %401 = vmatpush1.msra.mxu0 0.0
    %402 = vmatprep.mubr.f32.mxu0 0.0
    %403 = vmatmul.mubr.f32.gmra.mrb[0].mxu0 %v336
    %v404 = vpop.f32.mrb[0].mxu0
    %v405 = vadd.f32 0.0, %v404
    %v406 = vpop.f32.mrb[0].mxu0
    %v407 = vadd.f32 0.0, %v406
    %408 = vdwg.mxu0
    %v410 = vrot.slane %v405, 7
    %v412 = vadd.f32 %v314, %v410
    %v413 = vxor.u32 %v412, 2147483648
    %v414 = vmul.f32 %v413, 1.442695
    %v415 = vpow.pop %v414
    %v416 = vadd.f32 %v415, 1.0
    %v417 = vrcp.pop %v416
    %v418 = vmul.f32 1.0, %v417
    %v419 = vadd.f32 %v407, %v72
    %v421 = vrot.slane %v419, 7
    %v423 = vmul.f32 %v418, %v421
    %v424 = vadd.f32 %v316, %v423
    %v425 = vtanh.pop %v424
    %v426 = vsub.f32 1.0, %v418
    %428 = vrot.lane.b32.xlu0 %v425, 64
    %v429 = vpop.permute.xlu0 %428
    %v431 = vmul.f32 %v426, %v429
    %v432 = vrot.slane %v332, 7
    %v434 = vmul.f32 %v418, %v432
    %v435 = vadd.f32 %v431, %v434
    %v437 = vrot.slane %v435, 1
    %438 = vrot.lane.b32.xlu0 %v437, 64
    %v439 = vpop.permute.xlu0 %438
    %v440 = vsel %vm243, %v439, 0
    %442 = vmatprep.subr.mxu0 %v43
    %443 = vmatpush1.msra.mxu0 %v42
    %444 = vmatprep.subr.mxu0 %v45
    %445 = vmatpush1.msra.mxu0 %v44
    %446 = vmatprep.subr.mxu0 %v47
    %447 = vmatpush1.msra.mxu0 %v46
    %448 = vmatprep.subr.mxu0 %v49
    %449 = vmatpush1.msra.mxu0 %v48
    %450 = vmatprep.subr.mxu0 %v51
    %451 = vmatpush1.msra.mxu0 %v50
    %452 = vmatprep.subr.mxu0 %v53
    %453 = vmatpush1.msra.mxu0 %v52
    %454 = vmatprep.subr.mxu0 %v55
    %455 = vmatpush1.msra.mxu0 %v54
    %456 = vmatprep.subr.mxu0 %v57
    %457 = vmatpush1.msra.mxu0 %v56
    %458 = vmatprep.subr.mxu0 0.0
    %459 = vmatpush1.msra.mxu0 0.0
    %460 = vmatprep.subr.mxu0 0.0
    %461 = vmatpush1.msra.mxu0 0.0
    %462 = vmatprep.subr.mxu0 0.0
    %463 = vmatpush1.msra.mxu0 0.0
    %464 = vmatprep.subr.mxu0 0.0
    %465 = vmatpush1.msra.mxu0 0.0
    %466 = vmatprep.subr.mxu0 0.0
    %467 = vmatpush1.msra.mxu0 0.0
    %468 = vmatprep.subr.mxu0 0.0
    %469 = vmatpush1.msra.mxu0 0.0
    %470 = vmatprep.subr.mxu0 0.0
    %471 = vmatpush1.msra.mxu0 0.0
    %472 = vmatprep.subr.mxu0 0.0
    %473 = vmatpush1.msra.mxu0 0.0
    %474 = vmatprep.subr.mxu0 0.0
    %475 = vmatpush1.msra.mxu0 0.0
    %476 = vmatprep.subr.mxu0 0.0
    %477 = vmatpush1.msra.mxu0 0.0
    %478 = vmatprep.subr.mxu0 0.0
    %479 = vmatpush1.msra.mxu0 0.0
    %480 = vmatprep.subr.mxu0 0.0
    %481 = vmatpush1.msra.mxu0 0.0
    %482 = vmatprep.subr.mxu0 0.0
    %483 = vmatpush1.msra.mxu0 0.0
    %484 = vmatprep.subr.mxu0 0.0
    %485 = vmatpush1.msra.mxu0 0.0
    %486 = vmatprep.subr.mxu0 0.0
    %487 = vmatpush1.msra.mxu0 0.0
    %488 = vmatprep.subr.mxu0 0.0
    %489 = vmatpush1.msra.mxu0 0.0
    %490 = vmatprep.subr.mxu0 0.0
    %491 = vmatpush1.msra.mxu0 0.0
    %492 = vmatprep.subr.mxu0 0.0
    %493 = vmatpush1.msra.mxu0 0.0
    %494 = vmatprep.subr.mxu0 0.0
    %495 = vmatpush1.msra.mxu0 0.0
    %496 = vmatprep.subr.mxu0 0.0
    %497 = vmatpush1.msra.mxu0 0.0
    %498 = vmatprep.subr.mxu0 0.0
    %499 = vmatpush1.msra.mxu0 0.0
    %500 = vmatprep.subr.mxu0 0.0
    %501 = vmatpush1.msra.mxu0 0.0
    %502 = vmatprep.subr.mxu0 0.0
    %503 = vmatpush1.msra.mxu0 0.0
    %504 = vmatprep.subr.mxu0 0.0
    %505 = vmatpush1.msra.mxu0 0.0
    %506 = vmatprep.mubr.f32.mxu0 0.0
    %507 = vmatmul.mubr.f32.gmra.mrb[0].mxu0 %v440
    %v508 = vpop.f32.mrb[0].mxu0
    %v509 = vadd.f32 0.0, %v508
    %v510 = vpop.f32.mrb[0].mxu0
    %v511 = vadd.f32 0.0, %v510
    %512 = vdwg.mxu0
    %v514 = vrot.slane %v509, 6
    %v516 = vadd.f32 %v314, %v514
    %v517 = vxor.u32 %v516, 2147483648
    %v518 = vmul.f32 %v517, 1.442695
    %v519 = vpow.pop %v518
    %v520 = vadd.f32 %v519, 1.0
    %v521 = vrcp.pop %v520
    %v522 = vmul.f32 1.0, %v521
    %v523 = vadd.f32 %v511, %v72
    %v525 = vrot.slane %v523, 6
    %v527 = vmul.f32 %v522, %v525
    %v528 = vadd.f32 %v316, %v527
    %v529 = vtanh.pop %v528
    %v530 = vsub.f32 1.0, %v522
    %532 = vrot.lane.b32.xlu0 %v529, 64
    %v533 = vpop.permute.xlu0 %532
    %v535 = vmul.f32 %v530, %v533
    %v536 = vrot.slane %v435, 7
    %v538 = vmul.f32 %v522, %v536
    %v539 = vadd.f32 %v535, %v538
    %v541 = vrot.slane %v539, 2
    %542 = vrot.lane.b32.xlu0 %v541, 64
    %v543 = vpop.permute.xlu0 %542
    %v544 = vsel %vm243, %v543, 0
    %546 = vmatprep.subr.mxu0 %v43
    %547 = vmatpush1.msra.mxu0 %v42
    %548 = vmatprep.subr.mxu0 %v45
    %549 = vmatpush1.msra.mxu0 %v44
    %550 = vmatprep.subr.mxu0 %v47
    %551 = vmatpush1.msra.mxu0 %v46
    %552 = vmatprep.subr.mxu0 %v49
    %553 = vmatpush1.msra.mxu0 %v48
    %554 = vmatprep.subr.mxu0 %v51
    %555 = vmatpush1.msra.mxu0 %v50
    %556 = vmatprep.subr.mxu0 %v53
    %557 = vmatpush1.msra.mxu0 %v52
    %558 = vmatprep.subr.mxu0 %v55
    %559 = vmatpush1.msra.mxu0 %v54
    %560 = vmatprep.subr.mxu0 %v57
    %561 = vmatpush1.msra.mxu0 %v56
    %562 = vmatprep.subr.mxu0 0.0
    %563 = vmatpush1.msra.mxu0 0.0
    %564 = vmatprep.subr.mxu0 0.0
    %565 = vmatpush1.msra.mxu0 0.0
    %566 = vmatprep.subr.mxu0 0.0
    %567 = vmatpush1.msra.mxu0 0.0
    %568 = vmatprep.subr.mxu0 0.0
    %569 = vmatpush1.msra.mxu0 0.0
    %570 = vmatprep.subr.mxu0 0.0
    %571 = vmatpush1.msra.mxu0 0.0
    %572 = vmatprep.subr.mxu0 0.0
    %573 = vmatpush1.msra.mxu0 0.0
    %574 = vmatprep.subr.mxu0 0.0
    %575 = vmatpush1.msra.mxu0 0.0
    %576 = vmatprep.subr.mxu0 0.0
    %577 = vmatpush1.msra.mxu0 0.0
    %578 = vmatprep.subr.mxu0 0.0
    %579 = vmatpush1.msra.mxu0 0.0
    %580 = vmatprep.subr.mxu0 0.0
    %581 = vmatpush1.msra.mxu0 0.0
    %582 = vmatprep.subr.mxu0 0.0
    %583 = vmatpush1.msra.mxu0 0.0
    %584 = vmatprep.subr.mxu0 0.0
    %585 = vmatpush1.msra.mxu0 0.0
    %586 = vmatprep.subr.mxu0 0.0
    %587 = vmatpush1.msra.mxu0 0.0
    %588 = vmatprep.subr.mxu0 0.0
    %589 = vmatpush1.msra.mxu0 0.0
    %590 = vmatprep.subr.mxu0 0.0
    %591 = vmatpush1.msra.mxu0 0.0
    %592 = vmatprep.subr.mxu0 0.0
    %593 = vmatpush1.msra.mxu0 0.0
    %594 = vmatprep.subr.mxu0 0.0
    %595 = vmatpush1.msra.mxu0 0.0
    %596 = vmatprep.subr.mxu0 0.0
    %597 = vmatpush1.msra.mxu0 0.0
    %598 = vmatprep.subr.mxu0 0.0
    %599 = vmatpush1.msra.mxu0 0.0
    %600 = vmatprep.subr.mxu0 0.0
    %601 = vmatpush1.msra.mxu0 0.0
    %602 = vmatprep.subr.mxu0 0.0
    %603 = vmatpush1.msra.mxu0 0.0
    %604 = vmatprep.subr.mxu0 0.0
    %605 = vmatpush1.msra.mxu0 0.0
    %606 = vmatprep.subr.mxu0 0.0
    %607 = vmatpush1.msra.mxu0 0.0
    %608 = vmatprep.subr.mxu0 0.0
    %609 = vmatpush1.msra.mxu0 0.0
    %610 = vmatprep.mubr.f32.mxu0 0.0
    %611 = vmatmul.mubr.f32.gmra.mrb[0].mxu0 %v544
    %v612 = vpop.f32.mrb[0].mxu0
    %v613 = vadd.f32 0.0, %v612
    %v614 = vpop.f32.mrb[0].mxu0
    %v615 = vadd.f32 0.0, %v614
    %616 = vdwg.mxu0
    %v618 = vrot.slane %v613, 5
    %v620 = vadd.f32 %v314, %v618
    %v621 = vxor.u32 %v620, 2147483648
    %v622 = vmul.f32 %v621, 1.442695
    %v623 = vpow.pop %v622
    %v624 = vadd.f32 %v623, 1.0
    %v625 = vrcp.pop %v624
    %v626 = vmul.f32 1.0, %v625
    %v627 = vadd.f32 %v615, %v72
    %v629 = vrot.slane %v627, 5
    %v631 = vmul.f32 %v626, %v629
    %v632 = vadd.f32 %v316, %v631
    %v633 = vtanh.pop %v632
    %v634 = vsub.f32 1.0, %v626
    %636 = vrot.lane.b32.xlu0 %v633, 64
    %v637 = vpop.permute.xlu0 %636
    %v639 = vmul.f32 %v634, %v637
    %v640 = vrot.slane %v539, 7
    %v642 = vmul.f32 %v626, %v640
    %v643 = vadd.f32 %v639, %v642
    %v645 = vrot.slane %v643, 3
    %646 = vrot.lane.b32.xlu0 %v645, 64
    %v647 = vpop.permute.xlu0 %646
    %v648 = vsel %vm243, %v647, 0
    %650 = vmatprep.subr.mxu0 %v43
    %651 = vmatpush1.msra.mxu0 %v42
    %652 = vmatprep.subr.mxu0 %v45
    %653 = vmatpush1.msra.mxu0 %v44
    %654 = vmatprep.subr.mxu0 %v47
    %655 = vmatpush1.msra.mxu0 %v46
    %656 = vmatprep.subr.mxu0 %v49
    %657 = vmatpush1.msra.mxu0 %v48
    %658 = vmatprep.subr.mxu0 %v51
    %659 = vmatpush1.msra.mxu0 %v50
    %660 = vmatprep.subr.mxu0 %v53
    %661 = vmatpush1.msra.mxu0 %v52
    %662 = vmatprep.subr.mxu0 %v55
    %663 = vmatpush1.msra.mxu0 %v54
    %664 = vmatprep.subr.mxu0 %v57
    %665 = vmatpush1.msra.mxu0 %v56
    %666 = vmatprep.subr.mxu0 0.0
    %667 = vmatpush1.msra.mxu0 0.0
    %668 = vmatprep.subr.mxu0 0.0
    %669 = vmatpush1.msra.mxu0 0.0
    %670 = vmatprep.subr.mxu0 0.0
    %671 = vmatpush1.msra.mxu0 0.0
    %672 = vmatprep.subr.mxu0 0.0
    %673 = vmatpush1.msra.mxu0 0.0
    %674 = vmatprep.subr.mxu0 0.0
    %675 = vmatpush1.msra.mxu0 0.0
    %676 = vmatprep.subr.mxu0 0.0
    %677 = vmatpush1.msra.mxu0 0.0
    %678 = vmatprep.subr.mxu0 0.0
    %679 = vmatpush1.msra.mxu0 0.0
    %680 = vmatprep.subr.mxu0 0.0
    %681 = vmatpush1.msra.mxu0 0.0
    %682 = vmatprep.subr.mxu0 0.0
    %683 = vmatpush1.msra.mxu0 0.0
    %684 = vmatprep.subr.mxu0 0.0
    %685 = vmatpush1.msra.mxu0 0.0
    %686 = vmatprep.subr.mxu0 0.0
    %687 = vmatpush1.msra.mxu0 0.0
    %688 = vmatprep.subr.mxu0 0.0
    %689 = vmatpush1.msra.mxu0 0.0
    %690 = vmatprep.subr.mxu0 0.0
    %691 = vmatpush1.msra.mxu0 0.0
    %692 = vmatprep.subr.mxu0 0.0
    %693 = vmatpush1.msra.mxu0 0.0
    %694 = vmatprep.subr.mxu0 0.0
    %695 = vmatpush1.msra.mxu0 0.0
    %696 = vmatprep.subr.mxu0 0.0
    %697 = vmatpush1.msra.mxu0 0.0
    %698 = vmatprep.subr.mxu0 0.0
    %699 = vmatpush1.msra.mxu0 0.0
    %700 = vmatprep.subr.mxu0 0.0
    %701 = vmatpush1.msra.mxu0 0.0
    %702 = vmatprep.subr.mxu0 0.0
    %703 = vmatpush1.msra.mxu0 0.0
    %704 = vmatprep.subr.mxu0 0.0
    %705 = vmatpush1.msra.mxu0 0.0
    %706 = vmatprep.subr.mxu0 0.0
    %707 = vmatpush1.msra.mxu0 0.0
    %708 = vmatprep.subr.mxu0 0.0
    %709 = vmatpush1.msra.mxu0 0.0
    %710 = vmatprep.subr.mxu0 0.0
    %711 = vmatpush1.msra.mxu0 0.0
    %712 = vmatprep.subr.mxu0 0.0
    %713 = vmatpush1.msra.mxu0 0.0
    %714 = vmatprep.mubr.f32.mxu0 0.0
    %715 = vmatmul.mubr.f32.gmra.mrb[0].mxu0 %v648
    %v716 = vpop.f32.mrb[0].mxu0
    %v717 = vadd.f32 0.0, %v716
    %v718 = vpop.f32.mrb[0].mxu0
    %v719 = vadd.f32 0.0, %v718
    %720 = vdwg.mxu0
    %v722 = vrot.slane %v717, 4
    %v724 = vadd.f32 %v314, %v722
    %v725 = vxor.u32 %v724, 2147483648
    %v726 = vmul.f32 %v725, 1.442695
    %v727 = vpow.pop %v726
    %v728 = vadd.f32 %v727, 1.0
    %v729 = vrcp.pop %v728
    %v730 = vmul.f32 1.0, %v729
    %v731 = vadd.f32 %v719, %v72
    %v733 = vrot.slane %v731, 4
    %v735 = vmul.f32 %v730, %v733
    %v736 = vadd.f32 %v316, %v735
    %v737 = vtanh.pop %v736
    %v738 = vsub.f32 1.0, %v730
    %740 = vrot.lane.b32.xlu0 %v737, 64
    %v741 = vpop.permute.xlu0 %740
    %v743 = vmul.f32 %v738, %v741
    %v744 = vrot.slane %v643, 7
    %v746 = vmul.f32 %v730, %v744
    %v747 = vadd.f32 %v743, %v746
    %v749 = vrot.slane %v747, 4
    %750 = vrot.lane.b32.xlu0 %v749, 64
    %v751 = vpop.permute.xlu0 %750
    %v752 = vsel %vm243, %v751, 0
    %754 = vmatprep.subr.mxu0 %v43
    %755 = vmatpush1.msra.mxu0 %v42
    %756 = vmatprep.subr.mxu0 %v45
    %757 = vmatpush1.msra.mxu0 %v44
    %758 = vmatprep.subr.mxu0 %v47
    %759 = vmatpush1.msra.mxu0 %v46
    %760 = vmatprep.subr.mxu0 %v49
    %761 = vmatpush1.msra.mxu0 %v48
    %762 = vmatprep.subr.mxu0 %v51
    %763 = vmatpush1.msra.mxu0 %v50
    %764 = vmatprep.subr.mxu0 %v53
    %765 = vmatpush1.msra.mxu0 %v52
    %766 = vmatprep.subr.mxu0 %v55
    %767 = vmatpush1.msra.mxu0 %v54
    %768 = vmatprep.subr.mxu0 %v57
    %769 = vmatpush1.msra.mxu0 %v56
    %770 = vmatprep.subr.mxu0 0.0
    %771 = vmatpush1.msra.mxu0 0.0
    %772 = vmatprep.subr.mxu0 0.0
    %773 = vmatpush1.msra.mxu0 0.0
    %774 = vmatprep.subr.mxu0 0.0
    %775 = vmatpush1.msra.mxu0 0.0
    %776 = vmatprep.subr.mxu0 0.0
    %777 = vmatpush1.msra.mxu0 0.0
    %778 = vmatprep.subr.mxu0 0.0
    %779 = vmatpush1.msra.mxu0 0.0
    %780 = vmatprep.subr.mxu0 0.0
    %781 = vmatpush1.msra.mxu0 0.0
    %782 = vmatprep.subr.mxu0 0.0
    %783 = vmatpush1.msra.mxu0 0.0
    %784 = vmatprep.subr.mxu0 0.0
    %785 = vmatpush1.msra.mxu0 0.0
    %786 = vmatprep.subr.mxu0 0.0
    %787 = vmatpush1.msra.mxu0 0.0
    %788 = vmatprep.subr.mxu0 0.0
    %789 = vmatpush1.msra.mxu0 0.0
    %790 = vmatprep.subr.mxu0 0.0
    %791 = vmatpush1.msra.mxu0 0.0
    %792 = vmatprep.subr.mxu0 0.0
    %793 = vmatpush1.msra.mxu0 0.0
    %794 = vmatprep.subr.mxu0 0.0
    %795 = vmatpush1.msra.mxu0 0.0
    %796 = vmatprep.subr.mxu0 0.0
    %797 = vmatpush1.msra.mxu0 0.0
    %798 = vmatprep.subr.mxu0 0.0
    %799 = vmatpush1.msra.mxu0 0.0
    %800 = vmatprep.subr.mxu0 0.0
    %801 = vmatpush1.msra.mxu0 0.0
    %802 = vmatprep.subr.mxu0 0.0
    %803 = vmatpush1.msra.mxu0 0.0
    %804 = vmatprep.subr.mxu0 0.0
    %805 = vmatpush1.msra.mxu0 0.0
    %806 = vmatprep.subr.mxu0 0.0
    %807 = vmatpush1.msra.mxu0 0.0
    %808 = vmatprep.subr.mxu0 0.0
    %809 = vmatpush1.msra.mxu0 0.0
    %810 = vmatprep.subr.mxu0 0.0
    %811 = vmatpush1.msra.mxu0 0.0
    %812 = vmatprep.subr.mxu0 0.0
    %813 = vmatpush1.msra.mxu0 0.0
    %814 = vmatprep.subr.mxu0 0.0
    %815 = vmatpush1.msra.mxu0 0.0
    %816 = vmatprep.subr.mxu0 0.0
    %817 = vmatpush1.msra.mxu0 0.0
    %818 = vmatprep.mubr.f32.mxu0 0.0
    %819 = vmatmul.mubr.f32.gmra.mrb[0].mxu0 %v752
    %v820 = vpop.f32.mrb[0].mxu0
    %v821 = vadd.f32 0.0, %v820
    %v822 = vpop.f32.mrb[0].mxu0
    %v823 = vadd.f32 0.0, %v822
    %824 = vdwg.mxu0
    %v826 = vrot.slane %v821, 3
    %v828 = vadd.f32 %v314, %v826
    %v829 = vxor.u32 %v828, 2147483648
    %v830 = vmul.f32 %v829, 1.442695
    %v831 = vpow.pop %v830
    %v832 = vadd.f32 %v831, 1.0
    %v833 = vrcp.pop %v832
    %v834 = vmul.f32 1.0, %v833
    %v835 = vadd.f32 %v823, %v72
    %v837 = vrot.slane %v835, 3
    %v839 = vmul.f32 %v834, %v837
    %v840 = vadd.f32 %v316, %v839
    %v841 = vtanh.pop %v840
    %v842 = vsub.f32 1.0, %v834
    %844 = vrot.lane.b32.xlu0 %v841, 64
    %v845 = vpop.permute.xlu0 %844
    %v847 = vmul.f32 %v842, %v845
    %v848 = vrot.slane %v747, 7
    %v850 = vmul.f32 %v834, %v848
    %v851 = vadd.f32 %v847, %v850
    %v853 = vrot.slane %v851, 5
    %854 = vrot.lane.b32.xlu0 %v853, 64
    %v855 = vpop.permute.xlu0 %854
    %v856 = vsel %vm243, %v855, 0
    %858 = vmatprep.subr.mxu0 %v43
    %859 = vmatpush1.msra.mxu0 %v42
    %860 = vmatprep.subr.mxu0 %v45
    %861 = vmatpush1.msra.mxu0 %v44
    %862 = vmatprep.subr.mxu0 %v47
    %863 = vmatpush1.msra.mxu0 %v46
    %864 = vmatprep.subr.mxu0 %v49
    %865 = vmatpush1.msra.mxu0 %v48
    %866 = vmatprep.subr.mxu0 %v51
    %867 = vmatpush1.msra.mxu0 %v50
    %868 = vmatprep.subr.mxu0 %v53
    %869 = vmatpush1.msra.mxu0 %v52
    %870 = vmatprep.subr.mxu0 %v55
    %871 = vmatpush1.msra.mxu0 %v54
    %872 = vmatprep.subr.mxu0 %v57
    %873 = vmatpush1.msra.mxu0 %v56
    %874 = vmatprep.subr.mxu0 0.0
    %875 = vmatpush1.msra.mxu0 0.0
    %876 = vmatprep.subr.mxu0 0.0
    %877 = vmatpush1.msra.mxu0 0.0
    %878 = vmatprep.subr.mxu0 0.0
    %879 = vmatpush1.msra.mxu0 0.0
    %880 = vmatprep.subr.mxu0 0.0
    %881 = vmatpush1.msra.mxu0 0.0
    %882 = vmatprep.subr.mxu0 0.0
    %883 = vmatpush1.msra.mxu0 0.0
    %884 = vmatprep.subr.mxu0 0.0
    %885 = vmatpush1.msra.mxu0 0.0
    %886 = vmatprep.subr.mxu0 0.0
    %887 = vmatpush1.msra.mxu0 0.0
    %888 = vmatprep.subr.mxu0 0.0
    %889 = vmatpush1.msra.mxu0 0.0
    %890 = vmatprep.subr.mxu0 0.0
    %891 = vmatpush1.msra.mxu0 0.0
    %892 = vmatprep.subr.mxu0 0.0
    %893 = vmatpush1.msra.mxu0 0.0
    %894 = vmatprep.subr.mxu0 0.0
    %895 = vmatpush1.msra.mxu0 0.0
    %896 = vmatprep.subr.mxu0 0.0
    %897 = vmatpush1.msra.mxu0 0.0
    %898 = vmatprep.subr.mxu0 0.0
    %899 = vmatpush1.msra.mxu0 0.0
    %900 = vmatprep.subr.mxu0 0.0
    %901 = vmatpush1.msra.mxu0 0.0
    %902 = vmatprep.subr.mxu0 0.0
    %903 = vmatpush1.msra.mxu0 0.0
    %904 = vmatprep.subr.mxu0 0.0
    %905 = vmatpush1.msra.mxu0 0.0
    %906 = vmatprep.subr.mxu0 0.0
    %907 = vmatpush1.msra.mxu0 0.0
    %908 = vmatprep.subr.mxu0 0.0
    %909 = vmatpush1.msra.mxu0 0.0
    %910 = vmatprep.subr.mxu0 0.0
    %911 = vmatpush1.msra.mxu0 0.0
    %912 = vmatprep.subr.mxu0 0.0
    %913 = vmatpush1.msra.mxu0 0.0
    %914 = vmatprep.subr.mxu0 0.0
    %915 = vmatpush1.msra.mxu0 0.0
    %916 = vmatprep.subr.mxu0 0.0
    %917 = vmatpush1.msra.mxu0 0.0
    %918 = vmatprep.subr.mxu0 0.0
    %919 = vmatpush1.msra.mxu0 0.0
    %920 = vmatprep.subr.mxu0 0.0
    %921 = vmatpush1.msra.mxu0 0.0
    %922 = vmatprep.mubr.f32.mxu0 0.0
    %923 = vmatmul.mubr.f32.gmra.mrb[0].mxu0 %v856
    %v924 = vpop.f32.mrb[0].mxu0
    %v925 = vadd.f32 0.0, %v924
    %v926 = vpop.f32.mrb[0].mxu0
    %v927 = vadd.f32 0.0, %v926
    %928 = vdwg.mxu0
    %v930 = vrot.slane %v925, 2
    %v932 = vadd.f32 %v314, %v930
    %v933 = vxor.u32 %v932, 2147483648
    %v934 = vmul.f32 %v933, 1.442695
    %v935 = vpow.pop %v934
    %v936 = vadd.f32 %v935, 1.0
    %v937 = vrcp.pop %v936
    %v938 = vmul.f32 1.0, %v937
    %v939 = vadd.f32 %v927, %v72
    %v941 = vrot.slane %v939, 2
    %v943 = vmul.f32 %v938, %v941
    %v944 = vadd.f32 %v316, %v943
    %v945 = vtanh.pop %v944
    %v946 = vsub.f32 1.0, %v938
    %948 = vrot.lane.b32.xlu0 %v945, 64
    %v949 = vpop.permute.xlu0 %948
    %v951 = vmul.f32 %v946, %v949
    %v952 = vrot.slane %v851, 7
    %v954 = vmul.f32 %v938, %v952
    %v955 = vadd.f32 %v951, %v954
    %v957 = vrot.slane %v955, 6
    %958 = vrot.lane.b32.xlu0 %v957, 64
    %v959 = vpop.permute.xlu0 %958
    %v960 = vsel %vm243, %v959, 0
    %962 = vmatprep.subr.mxu0 %v43
    %963 = vmatpush1.msra.mxu0 %v42
    %964 = vmatprep.subr.mxu0 %v45
    %965 = vmatpush1.msra.mxu0 %v44
    %966 = vmatprep.subr.mxu0 %v47
    %967 = vmatpush1.msra.mxu0 %v46
    %968 = vmatprep.subr.mxu0 %v49
    %969 = vmatpush1.msra.mxu0 %v48
    %970 = vmatprep.subr.mxu0 %v51
    %971 = vmatpush1.msra.mxu0 %v50
    %972 = vmatprep.subr.mxu0 %v53
    %973 = vmatpush1.msra.mxu0 %v52
    %974 = vmatprep.subr.mxu0 %v55
    %975 = vmatpush1.msra.mxu0 %v54
    %976 = vmatprep.subr.mxu0 %v57
    %977 = vmatpush1.msra.mxu0 %v56
    %978 = vmatprep.subr.mxu0 0.0
    %979 = vmatpush1.msra.mxu0 0.0
    %980 = vmatprep.subr.mxu0 0.0
    %981 = vmatpush1.msra.mxu0 0.0
    %982 = vmatprep.subr.mxu0 0.0
    %983 = vmatpush1.msra.mxu0 0.0
    %984 = vmatprep.subr.mxu0 0.0
    %985 = vmatpush1.msra.mxu0 0.0
    %986 = vmatprep.subr.mxu0 0.0
    %987 = vmatpush1.msra.mxu0 0.0
    %988 = vmatprep.subr.mxu0 0.0
    %989 = vmatpush1.msra.mxu0 0.0
    %990 = vmatprep.subr.mxu0 0.0
    %991 = vmatpush1.msra.mxu0 0.0
    %992 = vmatprep.subr.mxu0 0.0
    %993 = vmatpush1.msra.mxu0 0.0
    %994 = vmatprep.subr.mxu0 0.0
    %995 = vmatpush1.msra.mxu0 0.0
    %996 = vmatprep.subr.mxu0 0.0
    %997 = vmatpush1.msra.mxu0 0.0
    %998 = vmatprep.subr.mxu0 0.0
    %999 = vmatpush1.msra.mxu0 0.0
    %1000 = vmatprep.subr.mxu0 0.0
    %1001 = vmatpush1.msra.mxu0 0.0
    %1002 = vmatprep.subr.mxu0 0.0
    %1003 = vmatpush1.msra.mxu0 0.0
    %1004 = vmatprep.subr.mxu0 0.0
    %1005 = vmatpush1.msra.mxu0 0.0
    %1006 = vmatprep.subr.mxu0 0.0
    %1007 = vmatpush1.msra.mxu0 0.0
    %1008 = vmatprep.subr.mxu0 0.0
    %1009 = vmatpush1.msra.mxu0 0.0
    %1010 = vmatprep.subr.mxu0 0.0
    %1011 = vmatpush1.msra.mxu0 0.0
    %1012 = vmatprep.subr.mxu0 0.0
    %1013 = vmatpush1.msra.mxu0 0.0
    %1014 = vmatprep.subr.mxu0 0.0
    %1015 = vmatpush1.msra.mxu0 0.0
    %1016 = vmatprep.subr.mxu0 0.0
    %1017 = vmatpush1.msra.mxu0 0.0
    %1018 = vmatprep.subr.mxu0 0.0
    %1019 = vmatpush1.msra.mxu0 0.0
    %1020 = vmatprep.subr.mxu0 0.0
    %1021 = vmatpush1.msra.mxu0 0.0
    %1022 = vmatprep.subr.mxu0 0.0
    %1023 = vmatpush1.msra.mxu0 0.0
    %1024 = vmatprep.subr.mxu0 0.0
    %1025 = vmatpush1.msra.mxu0 0.0
    %1026 = vmatprep.mubr.f32.mxu0 0.0
    %1027 = vmatmul.mubr.f32.gmra.mrb[0].mxu0 %v960
    %v1028 = vpop.f32.mrb[0].mxu0
    %v1029 = vadd.f32 0.0, %v1028
    %v1030 = vpop.f32.mrb[0].mxu0
    %v1031 = vadd.f32 0.0, %v1030
    %1032 = vdwg.mxu0
    %v1034 = vrot.slane %v1029, 1
    %v1036 = vadd.f32 %v314, %v1034
    %v1037 = vxor.u32 %v1036, 2147483648
    %v1038 = vmul.f32 %v1037, 1.442695
    %v1039 = vpow.pop %v1038
    %v1040 = vadd.f32 %v1039, 1.0
    %v1041 = vrcp.pop %v1040
    %v1042 = vmul.f32 1.0, %v1041
    %v1043 = vadd.f32 %v1031, %v72
    %v1045 = vrot.slane %v1043, 1
    %v1047 = vmul.f32 %v1042, %v1045
    %v1048 = vadd.f32 %v316, %v1047
    %v1049 = vtanh.pop %v1048
    %v1050 = vsub.f32 1.0, %v1042
    %1052 = vrot.lane.b32.xlu0 %v1049, 64
    %v1053 = vpop.permute.xlu0 %1052
    %v1055 = vmul.f32 %v1050, %v1053
    %v1056 = vrot.slane %v955, 7
    %v1058 = vmul.f32 %v1042, %v1056
    %v1059 = vadd.f32 %v1055, %v1058
    %v1061 = vrot.slane %v1059, 7
    %1062 = vrot.lane.b32.xlu0 %v1061, 64
    %v1063 = vpop.permute.xlu0 %1062
    %v1064 = vsel %vm243, %v1063, 0
    %1066 = vmatprep.subr.mxu0 0.0
    %1067 = vmatpush1.msra.mxu0 %v61
    %1068 = vmatprep.subr.mxu0 0.0
    %1069 = vmatpush1.msra.mxu0 %v62
    %1070 = vmatprep.subr.mxu0 0.0
    %1071 = vmatpush1.msra.mxu0 %v63
    %1072 = vmatprep.subr.mxu0 0.0
    %1073 = vmatpush1.msra.mxu0 %v64
    %1074 = vmatprep.subr.mxu0 0.0
    %1075 = vmatpush1.msra.mxu0 %v65
    %1076 = vmatprep.subr.mxu0 0.0
    %1077 = vmatpush1.msra.mxu0 %v66
    %1078 = vmatprep.subr.mxu0 0.0
    %1079 = vmatpush1.msra.mxu0 %v67
    %1080 = vmatprep.subr.mxu0 0.0
    %1081 = vmatpush1.msra.mxu0 %v68
    %1082 = vmatprep.subr.mxu0 0.0
    %1083 = vmatpush1.msra.mxu0 0.0
    %1084 = vmatprep.subr.mxu0 0.0
    %1085 = vmatpush1.msra.mxu0 0.0
    %1086 = vmatprep.subr.mxu0 0.0
    %1087 = vmatpush1.msra.mxu0 0.0
    %1088 = vmatprep.subr.mxu0 0.0
    %1089 = vmatpush1.msra.mxu0 0.0
    %1090 = vmatprep.subr.mxu0 0.0
    %1091 = vmatpush1.msra.mxu0 0.0
    %1092 = vmatprep.subr.mxu0 0.0
    %1093 = vmatpush1.msra.mxu0 0.0
    %1094 = vmatprep.subr.mxu0 0.0
    %1095 = vmatpush1.msra.mxu0 0.0
    %1096 = vmatprep.subr.mxu0 0.0
    %1097 = vmatpush1.msra.mxu0 0.0
    %1098 = vmatprep.subr.mxu0 0.0
    %1099 = vmatpush1.msra.mxu0 0.0
    %1100 = vmatprep.subr.mxu0 0.0
    %1101 = vmatpush1.msra.mxu0 0.0
    %1102 = vmatprep.subr.mxu0 0.0
    %1103 = vmatpush1.msra.mxu0 0.0
    %1104 = vmatprep.subr.mxu0 0.0
    %1105 = vmatpush1.msra.mxu0 0.0
    %1106 = vmatprep.subr.mxu0 0.0
    %1107 = vmatpush1.msra.mxu0 0.0
    %1108 = vmatprep.subr.mxu0 0.0
    %1109 = vmatpush1.msra.mxu0 0.0
    %1110 = vmatprep.subr.mxu0 0.0
    %1111 = vmatpush1.msra.mxu0 0.0
    %1112 = vmatprep.subr.mxu0 0.0
    %1113 = vmatpush1.msra.mxu0 0.0
    %1114 = vmatprep.subr.mxu0 0.0
    %1115 = vmatpush1.msra.mxu0 0.0
    %1116 = vmatprep.subr.mxu0 0.0
    %1117 = vmatpush1.msra.mxu0 0.0
    %1118 = vmatprep.subr.mxu0 0.0
    %1119 = vmatpush1.msra.mxu0 0.0
    %1120 = vmatprep.subr.mxu0 0.0
    %1121 = vmatpush1.msra.mxu0 0.0
    %1122 = vmatprep.subr.mxu0 0.0
    %1123 = vmatpush1.msra.mxu0 0.0
    %1124 = vmatprep.subr.mxu0 0.0
    %1125 = vmatpush1.msra.mxu0 0.0
    %1126 = vmatprep.subr.mxu0 0.0
    %1127 = vmatpush1.msra.mxu0 0.0
    %1128 = vmatprep.subr.mxu0 0.0
    %1129 = vmatpush1.msra.mxu0 0.0
    %1130 = vmatprep.mubr.f32.mxu0 0.0
    %1131 = vmatmul.mubr.f32.gmra.mrb[0].mxu0 %v1064
    %v1132 = vpop.f32.mrb[0].mxu0
    %v1133 = vadd.f32 %v73, %v1132
    %v1134 = vpop.f32.mrb[0].mxu0
    %1135 = vdwg.mxu0
    %vm1136 = vcmask 57344
    %1137 = vst.msk [vmem:[#allocation5] sm:$0x1] %vm1136, %v1133
    %1139 = vrot.lane.b32.xlu0 %v1133, 120
    %v1140 = vpop.permute.xlu0 %1139
    %1142 = vst.msk [vmem:[#allocation5 + $0x1] sm:$0x1] %vm1136, %v1140
    // Predicated region
    $region14: #{forward.1} parent=1 // pred_check
      _
    $region15: #{forward.1} parent=1 // pred_check_branch
      %1144 = sbr.rel (0) target = $region17
    $region16: #{forward.1} parent=1 // pred_region
      %s1146 = ssub.s32 32, 32
      %1147 = vsyncadd [#allocation4], %s1146
      %s1149 = sshll.u32 [#allocation5], 4
      %s1150 = int_to_ptr.vmem [resolvable:$true] %s1149
      %1152 = dma.vmem_to_hbm [thread:$0]  %s1150, 32, %s2, [#allocation4]
    $region17: #{forward.1} parent=1 // pred_fallthru
      _
    // Predicated region
    $region18: #{forward.1} parent=1 // pred_check
      _
    $region19: #{forward.1} parent=1 // pred_check_branch
      %1154 = sbr.rel (0) target = $region21
    $region20: #{forward.1} parent=1 // pred_region
      %1155 = dma.done [#allocation4], 32
    $region21: #{forward.1} parent=1 // pred_fallthru
      _
    %1156 = vsyncpa [#allocation3], 1
    %1157 = vsyncpa [#allocation4], 1

</llo_original>
